<compile_context>
chip_gen: v7x
topology: tpu7x:2x2x1
jax: 0.10.0
libtpu: 0.0.40
codegen_flags: <defaults>
</compile_context>

<pallas_src>
import math
import functools

import jax
import jax.numpy as jnp
from jax import lax
from jax.experimental import pallas as pl
from jax.experimental.pallas import tpu as pltpu


def bert_attention_kernel(
    xq_ref,        # (1, TQ, H) f32   query-tile rows of x (residual / LN source)
    xf_ref,        # (1, S,  H) f32   full sequence of this batch element (for K/V)
    wq_ref,        # (H, H)     compute_dtype
    bq_ref,        # (1, H)     f32
    wkv_ref,       # (H, 2H)    compute_dtype  fused [Wk | Wv]
    bkv_ref,       # (1, 2H)    f32            fused [bk | bv]
    wo_ref,        # (H, H)     compute_dtype
    bo_ref,        # (1, H)     f32
    g_ref,         # (1, H)     f32  layernorm gamma
    bln_ref,       # (1, H)     f32  layernorm beta
    o_ref,         # (1, TQ, H) output
    q3_ref,        # (n_heads, TQ, d) compute_dtype scratch (head-major q)
    k3_ref,        # (n_heads, S,  d) compute_dtype scratch (head-major k, persists over qi)
    v3_ref,        # (n_heads, S,  d) compute_dtype scratch (head-major v, persists over qi)
    ctx3_ref,      # (n_heads, TQ, d) compute_dtype scratch (per-head context)
    ctx_ref,       # (TQ, H)          compute_dtype scratch (merged context)
    *,
    n_heads: int,
    head_dim: int,
    eps: float,
    compute_dtype,
):
    TQ = xq_ref.shape[1]
    S = xf_ref.shape[1]
    H = xq_ref.shape[2]
    d = head_dim
    qi = pl.program_id(1)

    # --- K/V projection: once per batch element, cached across query tiles ---
    @pl.when(qi == 0)
    def _():
        xf = xf_ref[0].astype(compute_dtype)                       # (S, H)
        kv = jnp.dot(xf, wkv_ref[...],
                     preferred_element_type=jnp.float32) + bkv_ref[...]   # (S, 2H) f32
        kv = kv.astype(compute_dtype)
        # head split: static lane slices -> head-major scratch (data movement only)
        for h in range(n_heads):
            lo = h * d
            k3_ref[h] = kv[:, lo:lo + d]
            v3_ref[h] = kv[:, H + lo:H + lo + d]

    # --- Q projection for this query tile (1/sqrt(d) folded into q) ---
    x_tile = xq_ref[0]                                             # (TQ, H) f32
    q = jnp.dot(x_tile.astype(compute_dtype), wq_ref[...],
                preferred_element_type=jnp.float32) + bq_ref[...]  # (TQ, H) f32
    q = (q * (1.0 / math.sqrt(d))).astype(compute_dtype)
    for h in range(n_heads):                                       # static split copies
        lo = h * d
        q3_ref[h] = q[:, lo:lo + d]

    # --- per-head attention: fori_loop bounds the live set to one head ---
    def head_body(h, carry):
        qh = q3_ref[h]                                             # (TQ, d)
        kh = k3_ref[h]                                             # (S,  d)
        vh = v3_ref[h]                                             # (S,  d)
        # q @ k^T via contraction of the last axes (no materialized transpose)
        scores = lax.dot_general(qh, kh, (((1,), (1,)), ((), ())),
                                 preferred_element_type=jnp.float32)   # (TQ, S)
        m = jnp.max(scores, axis=-1, keepdims=True)
        p = jnp.exp(scores - m)
        denom = jnp.sum(p, axis=-1, keepdims=True)
        # EUP approximate reciprocal + one Newton step (on (TQ,1): negligible VALU)
        r = pl.reciprocal(denom, approx=True)
        r = r * (2.0 - denom * r)
        attn = (p * r).astype(compute_dtype)                       # softmax
        ctx3_ref[h] = jnp.dot(attn, vh,
                              preferred_element_type=jnp.float32
                              ).astype(compute_dtype)              # (TQ, d)
        return carry

    lax.fori_loop(0, n_heads, head_body, 0)

    # --- merge heads (static lane-slice stores) + ONE fused output projection ---
    for h in range(n_heads):
        lo = h * d
        ctx_ref[:, lo:lo + d] = ctx3_ref[h]
    proj = jnp.dot(ctx_ref[...], wo_ref[...],
                   preferred_element_type=jnp.float32) + bo_ref[...]      # (TQ, H) f32

    # --- AttentionOutput: residual + LayerNorm (all f32) ---
    hidden = proj + x_tile
    mu = jnp.mean(hidden, axis=-1, keepdims=True)
    centered = hidden - mu
    var = jnp.mean(centered * centered, axis=-1, keepdims=True)    # biased, like nn.LayerNorm
    out = centered * lax.rsqrt(var + eps) * g_ref[...] + bln_ref[...]
    o_ref[0] = out.astype(o_ref.dtype)


def _pick_q_tile(S):
    if S <= 256:
        return S
    for t in (256, 128):
        if S % t == 0:
            return t
    return S


def _vmem_limit_bytes(S, TQ, H, n_heads, d, cbytes):
    def rup(n, m):
        return ((n + m - 1) // m) * m
    lane, sub = 128, 8
    d_p, h_p, h2_p = rup(d, lane), rup(H, lane), rup(2 * H, lane)
    s_p, tq_p = rup(S, sub), rup(TQ, sub)
    # pipeline blocks (double-buffered by default)
    blocks = 2 * (
        (tq_p + s_p + tq_p) * h_p * 4                   # x tile, x full, out (f32)
        + (H * h_p + H * h2_p + H * h_p) * cbytes       # Wq, Wkv, Wo
        + sub * (4 * h_p + h2_p) * 4                    # bq, bkv, bo, gamma, beta (f32)
    )
    # persistent scratch
    scratch = (2 * n_heads * s_p * d_p + 2 * n_heads * tq_p * d_p) * cbytes \
        + tq_p * h_p * cbytes
    # transient values (K/V and Q projections, one head's scores/probs, proj/hidden/LN)
    transient = (s_p * h2_p + tq_p * h_p) * 4 \
        + 3 * tq_p * rup(S, lane) * 4 \
        + 4 * tq_p * h_p * 4
    est = blocks + scratch + transient
    return int(min(64 * 2 ** 20, max(8 * 2 ** 20, (est * 5) // 4)))


def _cost_estimate(B, S, TQ, H, n_heads, cbytes):
    d = H // n_heads
    n_q = S // TQ
    flops = B * (
        2 * S * H * (2 * H)               # fused K/V projection (once per batch element)
        + n_q * (2 * TQ * H * H)          # Q projection (per query tile)
        + 2 * (2 * n_heads * S * S * d)   # scores + attn @ V over all tiles (n_q*TQ = S)
        + n_q * (2 * TQ * H * H)          # single fused output projection
    )
    transcendentals = B * n_heads * (S * S + S)     # exp + approx reciprocal
    bytes_accessed = (
        2 * B * S * H * 4                 # x read (query tiles + one full copy per batch)
        + B * S * H * 4                   # output write
        + 4 * H * H * cbytes              # Wq + Wkv + Wo, DMA'd once
        + 6 * H * 4                       # biases + LayerNorm params
    )
    return pl.CostEstimate(flops=int(flops), transcendentals=int(transcendentals),
                           bytes_accessed=int(bytes_accessed))


def bert_attention(x, params, *, n_heads: int, eps: float,
                   compute_dtype=jnp.bfloat16, q_tile=None):
    """x: (B, S, H) float32. params: dict of weights (see init_params).

    compute_dtype controls only the MXU operand dtype (bf16 by default on all
    TPU generations); residual, LayerNorm, biases and accumulation stay f32.
    """
    B, S, H = x.shape
    assert H % n_heads == 0
    d = H // n_heads

    TQ = _pick_q_tile(S) if q_tile is None else q_tile
    assert S % TQ == 0 and (TQ == S or TQ % 8 == 0), "bad query tile"
    n_q = S // TQ

    cbytes = jnp.dtype(compute_dtype).itemsize

    # Pack weights in the wrapper (constant-folded under jit in real use).
    w_q = params["wq"].astype(compute_dtype)                                   # (H, H)
    w_kv = jnp.concatenate([params["wk"], params["wv"]], axis=1).astype(compute_dtype)  # (H, 2H)
    b_q = params["bq"]                                                         # (1, H)
    b_kv = jnp.concatenate([params["bk"], params["bv"]], axis=1)               # (1, 2H)
    w_o = params["wo"].astype(compute_dtype)                                   # (H, H)

    kernel = functools.partial(
        bert_attention_kernel,
        n_heads=n_heads, head_dim=d, eps=eps, compute_dtype=compute_dtype,
    )

    vec_spec = pl.BlockSpec((1, H), lambda b, qi: (0, 0))

    grid_spec = pltpu.PrefetchScalarGridSpec(
        num_scalar_prefetch=0,
        grid=(B, n_q),
        in_specs=[
            pl.BlockSpec((1, TQ, H), lambda b, qi: (b, qi, 0)),     # x (query tile)
            pl.BlockSpec((1, S, H), lambda b, qi: (b, 0, 0)),       # x (full seq, for K/V)
            pl.BlockSpec((H, H), lambda b, qi: (0, 0)),             # Wq
            vec_spec,                                               # bq
            pl.BlockSpec((H, 2 * H), lambda b, qi: (0, 0)),         # Wkv
            pl.BlockSpec((1, 2 * H), lambda b, qi: (0, 0)),         # bkv
            pl.BlockSpec((H, H), lambda b, qi: (0, 0)),             # Wo
            vec_spec,                                               # bo
            vec_spec,                                               # gamma
            vec_spec,                                               # beta
        ],
        out_specs=pl.BlockSpec((1, TQ, H), lambda b, qi: (b, qi, 0)),
        scratch_shapes=[
            pltpu.VMEM((n_heads, TQ, d), compute_dtype),            # q (head-major)
            pltpu.VMEM((n_heads, S, d), compute_dtype),             # k (head-major, cached)
            pltpu.VMEM((n_heads, S, d), compute_dtype),             # v (head-major, cached)
            pltpu.VMEM((n_heads, TQ, d), compute_dtype),            # per-head context
            pltpu.VMEM((TQ, H), compute_dtype),                     # merged context
        ],
    )

    return pl.pallas_call(
        kernel,
        out_shape=jax.ShapeDtypeStruct((B, S, H), x.dtype),
        grid_spec=grid_spec,
        compiler_params=pltpu.CompilerParams(
            # batch axis megacore-parallel; qi axis sequential (K/V scratch persists)
            dimension_semantics=("parallel", "arbitrary"),
            vmem_limit_bytes=_vmem_limit_bytes(S, TQ, H, n_heads, d, cbytes),
        ),
        cost_estimate=_cost_estimate(B, S, TQ, H, n_heads, cbytes),
    )(
        x, x,                     # query-tile view and full-sequence view of the same array
        w_q, b_q,
        w_kv, b_kv,
        w_o, params["bo"],
        params["gamma"], params["beta"],
    )


def init_params(key, hidden_dim):
    """Deterministic synthetic parameters. Weights stored as (in, out)."""
    ks = jax.random.split(key, 10)
    scale = 1.0 / math.sqrt(hidden_dim)

    def mat(k):
        return (jax.random.uniform(k, (hidden_dim, hidden_dim), jnp.float32) * 2 - 1) * scale

    def vec(k):
        return (jax.random.uniform(k, (1, hidden_dim), jnp.float32) * 2 - 1) * scale

    return {
        "wq": mat(ks[0]), "bq": vec(ks[1]),
        "wk": mat(ks[2]), "bk": vec(ks[3]),
        "wv": mat(ks[4]), "bv": vec(ks[5]),
        "wo": mat(ks[6]), "bo": vec(ks[7]),
        "gamma": jnp.ones((1, hidden_dim), jnp.float32),
        "beta": jnp.zeros((1, hidden_dim), jnp.float32),
    }


def reference_bert_attention(x, params, *, n_heads: int, eps: float):
    """Pure-JAX reference mirroring the PyTorch forward (mask=None, eval mode)."""
    B, S, H = x.shape
    d = H // n_heads
    q = x @ params["wq"] + params["bq"]
    k = x @ params["wk"] + params["bk"]
    v = x @ params["wv"] + params["bv"]
    qh = q.reshape(B, S, n_heads, d).transpose(0, 2, 1, 3)
    kh = k.reshape(B, S, n_heads, d).transpose(0, 2, 1, 3)
    vh = v.reshape(B, S, n_heads, d).transpose(0, 2, 1, 3)
    attn = jnp.einsum("bhqd,bhkd->bhqk", qh, kh) / math.sqrt(d)
    attn = jax.nn.softmax(attn, axis=-1)
    ctx = jnp.einsum("bhqk,bhkd->bhqd", attn, vh)
    ctx = ctx.transpose(0, 2, 1, 3).reshape(B, S, H)
    proj = ctx @ params["wo"] + params["bo"]
    hidden = proj + x
    mu = hidden.mean(-1, keepdims=True)
    var = ((hidden - mu) ** 2).mean(-1, keepdims=True)
    return (hidden - mu) / jnp.sqrt(var + eps) * params["gamma"] + params["beta"]


if __name__ == "__main__":
    n_heads = 4
    layer_norm_eps = 1e-12

    key = jax.random.PRNGKey(0)
    k_x, k_p, k_x2 = jax.random.split(key, 3)

    # --- Test 1: small shapes consistent with the module (B=2, S=8, H=32) ---
    batch, seq_len, hidden_dim = 2, 8, 32
    x = jax.random.normal(k_x, (batch, seq_len, hidden_dim), jnp.float32)
    params = init_params(k_p, hidden_dim)

    ref = reference_bert_attention(x, params, n_heads=n_heads, eps=layer_norm_eps)

    # f32 MXU-operand path: strict check vs pure-JAX reference.
    out_f32 = jax.block_until_ready(
        bert_attention(x, params, n_heads=n_heads, eps=layer_norm_eps,
                       compute_dtype=jnp.float32))
    assert out_f32.shape == (batch, seq_len, hidden_dim)
    assert jnp.allclose(out_f32, ref, atol=1e-4, rtol=1e-4), "f32 mismatch vs reference"

    # Default path (bf16 MXU operands on all generations): loose tolerance;
    # the deviation comes from bf16 q/k/v/attn/ctx operands (accumulation is f32).
    out_bf16 = jax.block_until_ready(
        bert_attention(x, params, n_heads=n_heads, eps=layer_norm_eps))
    assert jnp.allclose(out_bf16, ref, atol=1e-1, rtol=1e-1), "bf16 mismatch vs reference"

    # --- Test 2: exercise the query-tile grid axis + per-batch K/V caching ---
    seq_len2 = 256
    x2 = jax.random.normal(k_x2, (batch, seq_len2, hidden_dim), jnp.float32)
    ref2 = reference_bert_attention(x2, params, n_heads=n_heads, eps=layer_norm_eps)
    out2 = jax.block_until_ready(
        bert_attention(x2, params, n_heads=n_heads, eps=layer_norm_eps,
                       compute_dtype=jnp.float32, q_tile=128))
    assert out2.shape == (batch, seq_len2, hidden_dim)
    assert jnp.allclose(out2, ref2, atol=5e-4, rtol=5e-4), "tiled f32 mismatch vs reference"

    print("KERNEL_OK")
</pallas_src>

<mosaic_0001>
module attributes {stable_mosaic.version = 11 : i64} {
  func.func @bert_attention_kernel(%arg0: i32, %arg1: i32, %arg2: memref<1x8x32xf32, #tpu.memory_space<vmem>>, %arg3: memref<1x8x32xf32, #tpu.memory_space<vmem>>, %arg4: memref<32x32xf32, #tpu.memory_space<vmem>>, %arg5: memref<1x32xf32, #tpu.memory_space<vmem>>, %arg6: memref<32x64xf32, #tpu.memory_space<vmem>>, %arg7: memref<1x64xf32, #tpu.memory_space<vmem>>, %arg8: memref<32x32xf32, #tpu.memory_space<vmem>>, %arg9: memref<1x32xf32, #tpu.memory_space<vmem>>, %arg10: memref<1x32xf32, #tpu.memory_space<vmem>>, %arg11: memref<1x32xf32, #tpu.memory_space<vmem>>, %arg12: memref<1x8x32xf32, #tpu.memory_space<vmem>>, %arg13: memref<4x8x8xf32, #tpu.memory_space<vmem>>, %arg14: memref<4x8x8xf32, #tpu.memory_space<vmem>>, %arg15: memref<4x8x8xf32, #tpu.memory_space<vmem>>, %arg16: memref<4x8x8xf32, #tpu.memory_space<vmem>>, %arg17: memref<8x32xf32, #tpu.memory_space<vmem>>) attributes {dimension_semantics = [#tpu.dimension_semantics<parallel>, #tpu.dimension_semantics<arbitrary>], iteration_bounds = array<i64: 2, 1>, scalar_prefetch = 0 : i64, scratch_operands = 5 : i64, tpu.core_type = #tpu.core_type<tc>, window_params = [{transform_indices = @transform_0, window_bounds = array<i64: 1, 8, 32>}, {transform_indices = @transform_1, window_bounds = array<i64: 1, 8, 32>}, {pipeline_mode = #tpu.pipeline_mode<synchronous>, transform_indices = @transform_2, window_bounds = array<i64: 32, 32>}, {pipeline_mode = #tpu.pipeline_mode<synchronous>, transform_indices = @transform_3, window_bounds = array<i64: 1, 32>}, {pipeline_mode = #tpu.pipeline_mode<synchronous>, transform_indices = @transform_4, window_bounds = array<i64: 32, 64>}, {pipeline_mode = #tpu.pipeline_mode<synchronous>, transform_indices = @transform_5, window_bounds = array<i64: 1, 64>}, {pipeline_mode = #tpu.pipeline_mode<synchronous>, transform_indices = @transform_6, window_bounds = array<i64: 32, 32>}, {pipeline_mode = #tpu.pipeline_mode<synchronous>, transform_indices = @transform_7, window_bounds = array<i64: 1, 32>}, {pipeline_mode = #tpu.pipeline_mode<synchronous>, transform_indices = @transform_8, window_bounds = array<i64: 1, 32>}, {pipeline_mode = #tpu.pipeline_mode<synchronous>, transform_indices = @transform_9, window_bounds = array<i64: 1, 32>}, {transform_indices = @transform_10, window_bounds = array<i64: 1, 8, 32>}]} {
    %c0_i32 = arith.constant 0 : i32
    %0 = arith.cmpi eq, %arg1, %c0_i32 : i32
    %1 = arith.extui %0 : i1 to i32
    %c0_i32_0 = arith.constant 0 : i32
    %2 = arith.cmpi ne, %1, %c0_i32_0 : i32
    scf.if %2 {
      %c0_55 = arith.constant 0 : index
      %c0_56 = arith.constant 0 : index
      %c0_57 = arith.constant 0 : index
      %73 = vector.load %arg3[%c0_55, %c0_56, %c0_57] : memref<1x8x32xf32, #tpu.memory_space<vmem>>, vector<1x8x32xf32>
      %74 = vector.shape_cast %73 : vector<1x8x32xf32> to vector<8x32xf32>
      %c0_58 = arith.constant 0 : index
      %c0_59 = arith.constant 0 : index
      %75 = vector.load %arg6[%c0_58, %c0_59] : memref<32x64xf32, #tpu.memory_space<vmem>>, vector<32x64xf32>
      %cst_60 = arith.constant dense<0.000000e+00> : vector<8x64xf32>
      %76 = tpu.matmul %74, %75, %cst_60 {dimension_numbers = #tpu.dot_dimension_numbers<[1], [0], [0], [1], [0, 0, 1, 1], [], []>} : vector<8x32xf32>, vector<32x64xf32>, vector<8x64xf32> -> vector<8x64xf32>
      %c0_61 = arith.constant 0 : index
      %c0_62 = arith.constant 0 : index
      %77 = vector.load %arg7[%c0_61, %c0_62] : memref<1x64xf32, #tpu.memory_space<vmem>>, vector<1x64xf32>
      %78 = vector.broadcast %77 : vector<1x64xf32> to vector<8x64xf32>
      %79 = arith.addf %76, %78 : vector<8x64xf32>
      %80 = vector.extract_strided_slice %79 {offsets = [0, 0], sizes = [8, 8], strides = [1, 1]} : vector<8x64xf32> to vector<8x8xf32>
      %c0_63 = arith.constant 0 : index
      %c0_64 = arith.constant 0 : index
      %c0_65 = arith.constant 0 : index
      %81 = vector.load %arg14[%c0_63, %c0_64, %c0_65] : memref<4x8x8xf32, #tpu.memory_space<vmem>>, vector<1x8x8xf32>
      %82 = vector.shape_cast %81 : vector<1x8x8xf32> to vector<8x8xf32>
      %83 = vector.shape_cast %80 : vector<8x8xf32> to vector<1x8x8xf32>
      tpu.vector_store %arg14[%c0_63, %c0_64, %c0_65], %83 {strides = array<i32>} : memref<4x8x8xf32, #tpu.memory_space<vmem>>, vector<1x8x8xf32>,
      %84 = vector.extract_strided_slice %79 {offsets = [0, 32], sizes = [8, 8], strides = [1, 1]} : vector<8x64xf32> to vector<8x8xf32>
      %c0_66 = arith.constant 0 : index
      %c0_67 = arith.constant 0 : index
      %c0_68 = arith.constant 0 : index
      %85 = vector.load %arg15[%c0_66, %c0_67, %c0_68] : memref<4x8x8xf32, #tpu.memory_space<vmem>>, vector<1x8x8xf32>
      %86 = vector.shape_cast %85 : vector<1x8x8xf32> to vector<8x8xf32>
      %87 = vector.shape_cast %84 : vector<8x8xf32> to vector<1x8x8xf32>
      tpu.vector_store %arg15[%c0_66, %c0_67, %c0_68], %87 {strides = array<i32>} : memref<4x8x8xf32, #tpu.memory_space<vmem>>, vector<1x8x8xf32>,
      %88 = vector.extract_strided_slice %79 {offsets = [0, 8], sizes = [8, 8], strides = [1, 1]} : vector<8x64xf32> to vector<8x8xf32>
      %c1_69 = arith.constant 1 : index
      %c0_70 = arith.constant 0 : index
      %c0_71 = arith.constant 0 : index
      %89 = vector.load %arg14[%c1_69, %c0_70, %c0_71] : memref<4x8x8xf32, #tpu.memory_space<vmem>>, vector<1x8x8xf32>
      %90 = vector.shape_cast %89 : vector<1x8x8xf32> to vector<8x8xf32>
      %91 = vector.shape_cast %88 : vector<8x8xf32> to vector<1x8x8xf32>
      tpu.vector_store %arg14[%c1_69, %c0_70, %c0_71], %91 {strides = array<i32>} : memref<4x8x8xf32, #tpu.memory_space<vmem>>, vector<1x8x8xf32>,
      %92 = vector.extract_strided_slice %79 {offsets = [0, 40], sizes = [8, 8], strides = [1, 1]} : vector<8x64xf32> to vector<8x8xf32>
      %c1_72 = arith.constant 1 : index
      %c0_73 = arith.constant 0 : index
      %c0_74 = arith.constant 0 : index
      %93 = vector.load %arg15[%c1_72, %c0_73, %c0_74] : memref<4x8x8xf32, #tpu.memory_space<vmem>>, vector<1x8x8xf32>
      %94 = vector.shape_cast %93 : vector<1x8x8xf32> to vector<8x8xf32>
      %95 = vector.shape_cast %92 : vector<8x8xf32> to vector<1x8x8xf32>
      tpu.vector_store %arg15[%c1_72, %c0_73, %c0_74], %95 {strides = array<i32>} : memref<4x8x8xf32, #tpu.memory_space<vmem>>, vector<1x8x8xf32>,
      %96 = vector.extract_strided_slice %79 {offsets = [0, 16], sizes = [8, 8], strides = [1, 1]} : vector<8x64xf32> to vector<8x8xf32>
      %c2_75 = arith.constant 2 : index
      %c0_76 = arith.constant 0 : index
      %c0_77 = arith.constant 0 : index
      %97 = vector.load %arg14[%c2_75, %c0_76, %c0_77] : memref<4x8x8xf32, #tpu.memory_space<vmem>>, vector<1x8x8xf32>
      %98 = vector.shape_cast %97 : vector<1x8x8xf32> to vector<8x8xf32>
      %99 = vector.shape_cast %96 : vector<8x8xf32> to vector<1x8x8xf32>
      tpu.vector_store %arg14[%c2_75, %c0_76, %c0_77], %99 {strides = array<i32>} : memref<4x8x8xf32, #tpu.memory_space<vmem>>, vector<1x8x8xf32>,
      %100 = vector.extract_strided_slice %79 {offsets = [0, 48], sizes = [8, 8], strides = [1, 1]} : vector<8x64xf32> to vector<8x8xf32>
      %c2_78 = arith.constant 2 : index
      %c0_79 = arith.constant 0 : index
      %c0_80 = arith.constant 0 : index
      %101 = vector.load %arg15[%c2_78, %c0_79, %c0_80] : memref<4x8x8xf32, #tpu.memory_space<vmem>>, vector<1x8x8xf32>
      %102 = vector.shape_cast %101 : vector<1x8x8xf32> to vector<8x8xf32>
      %103 = vector.shape_cast %100 : vector<8x8xf32> to vector<1x8x8xf32>
      tpu.vector_store %arg15[%c2_78, %c0_79, %c0_80], %103 {strides = array<i32>} : memref<4x8x8xf32, #tpu.memory_space<vmem>>, vector<1x8x8xf32>,
      %104 = vector.extract_strided_slice %79 {offsets = [0, 24], sizes = [8, 8], strides = [1, 1]} : vector<8x64xf32> to vector<8x8xf32>
      %c3_81 = arith.constant 3 : index
      %c0_82 = arith.constant 0 : index
      %c0_83 = arith.constant 0 : index
      %105 = vector.load %arg14[%c3_81, %c0_82, %c0_83] : memref<4x8x8xf32, #tpu.memory_space<vmem>>, vector<1x8x8xf32>
      %106 = vector.shape_cast %105 : vector<1x8x8xf32> to vector<8x8xf32>
      %107 = vector.shape_cast %104 : vector<8x8xf32> to vector<1x8x8xf32>
      tpu.vector_store %arg14[%c3_81, %c0_82, %c0_83], %107 {strides = array<i32>} : memref<4x8x8xf32, #tpu.memory_space<vmem>>, vector<1x8x8xf32>,
      %108 = vector.extract_strided_slice %79 {offsets = [0, 56], sizes = [8, 8], strides = [1, 1]} : vector<8x64xf32> to vector<8x8xf32>
      %c3_84 = arith.constant 3 : index
      %c0_85 = arith.constant 0 : index
      %c0_86 = arith.constant 0 : index
      %109 = vector.load %arg15[%c3_84, %c0_85, %c0_86] : memref<4x8x8xf32, #tpu.memory_space<vmem>>, vector<1x8x8xf32>
      %110 = vector.shape_cast %109 : vector<1x8x8xf32> to vector<8x8xf32>
      %111 = vector.shape_cast %108 : vector<8x8xf32> to vector<1x8x8xf32>
      tpu.vector_store %arg15[%c3_84, %c0_85, %c0_86], %111 {strides = array<i32>} : memref<4x8x8xf32, #tpu.memory_space<vmem>>, vector<1x8x8xf32>,
    } else {
    }
    %c0 = arith.constant 0 : index
    %c0_1 = arith.constant 0 : index
    %c0_2 = arith.constant 0 : index
    %3 = vector.load %arg2[%c0, %c0_1, %c0_2] : memref<1x8x32xf32, #tpu.memory_space<vmem>>, vector<1x8x32xf32>
    %4 = vector.shape_cast %3 : vector<1x8x32xf32> to vector<8x32xf32>
    %c0_3 = arith.constant 0 : index
    %c0_4 = arith.constant 0 : index
    %5 = vector.load %arg4[%c0_3, %c0_4] : memref<32x32xf32, #tpu.memory_space<vmem>>, vector<32x32xf32>
    %cst = arith.constant dense<0.000000e+00> : vector<8x32xf32>
    %6 = tpu.matmul %4, %5, %cst {dimension_numbers = #tpu.dot_dimension_numbers<[1], [0], [0], [1], [0, 0, 1, 1], [], []>} : vector<8x32xf32>, vector<32x32xf32>, vector<8x32xf32> -> vector<8x32xf32>
    %c0_5 = arith.constant 0 : index
    %c0_6 = arith.constant 0 : index
    %7 = vector.load %arg5[%c0_5, %c0_6] : memref<1x32xf32, #tpu.memory_space<vmem>>, vector<1x32xf32>
    %8 = vector.broadcast %7 : vector<1x32xf32> to vector<8x32xf32>
    %9 = arith.addf %6, %8 : vector<8x32xf32>
    %cst_7 = arith.constant 0.353553385 : f32
    %10 = vector.broadcast %cst_7 : f32 to vector<8x32xf32>
    %11 = arith.mulf %9, %10 : vector<8x32xf32>
    %12 = vector.extract_strided_slice %11 {offsets = [0, 0], sizes = [8, 8], strides = [1, 1]} : vector<8x32xf32> to vector<8x8xf32>
    %c0_8 = arith.constant 0 : index
    %c0_9 = arith.constant 0 : index
    %c0_10 = arith.constant 0 : index
    %13 = vector.load %arg13[%c0_8, %c0_9, %c0_10] : memref<4x8x8xf32, #tpu.memory_space<vmem>>, vector<1x8x8xf32>
    %14 = vector.shape_cast %13 : vector<1x8x8xf32> to vector<8x8xf32>
    %15 = vector.shape_cast %12 : vector<8x8xf32> to vector<1x8x8xf32>
    tpu.vector_store %arg13[%c0_8, %c0_9, %c0_10], %15 {strides = array<i32>} : memref<4x8x8xf32, #tpu.memory_space<vmem>>, vector<1x8x8xf32>,
    %16 = vector.extract_strided_slice %11 {offsets = [0, 8], sizes = [8, 8], strides = [1, 1]} : vector<8x32xf32> to vector<8x8xf32>
    %c1 = arith.constant 1 : index
    %c0_11 = arith.constant 0 : index
    %c0_12 = arith.constant 0 : index
    %17 = vector.load %arg13[%c1, %c0_11, %c0_12] : memref<4x8x8xf32, #tpu.memory_space<vmem>>, vector<1x8x8xf32>
    %18 = vector.shape_cast %17 : vector<1x8x8xf32> to vector<8x8xf32>
    %19 = vector.shape_cast %16 : vector<8x8xf32> to vector<1x8x8xf32>
    tpu.vector_store %arg13[%c1, %c0_11, %c0_12], %19 {strides = array<i32>} : memref<4x8x8xf32, #tpu.memory_space<vmem>>, vector<1x8x8xf32>,
    %20 = vector.extract_strided_slice %11 {offsets = [0, 16], sizes = [8, 8], strides = [1, 1]} : vector<8x32xf32> to vector<8x8xf32>
    %c2 = arith.constant 2 : index
    %c0_13 = arith.constant 0 : index
    %c0_14 = arith.constant 0 : index
    %21 = vector.load %arg13[%c2, %c0_13, %c0_14] : memref<4x8x8xf32, #tpu.memory_space<vmem>>, vector<1x8x8xf32>
    %22 = vector.shape_cast %21 : vector<1x8x8xf32> to vector<8x8xf32>
    %23 = vector.shape_cast %20 : vector<8x8xf32> to vector<1x8x8xf32>
    tpu.vector_store %arg13[%c2, %c0_13, %c0_14], %23 {strides = array<i32>} : memref<4x8x8xf32, #tpu.memory_space<vmem>>, vector<1x8x8xf32>,
    %24 = vector.extract_strided_slice %11 {offsets = [0, 24], sizes = [8, 8], strides = [1, 1]} : vector<8x32xf32> to vector<8x8xf32>
    %c3 = arith.constant 3 : index
    %c0_15 = arith.constant 0 : index
    %c0_16 = arith.constant 0 : index
    %25 = vector.load %arg13[%c3, %c0_15, %c0_16] : memref<4x8x8xf32, #tpu.memory_space<vmem>>, vector<1x8x8xf32>
    %26 = vector.shape_cast %25 : vector<1x8x8xf32> to vector<8x8xf32>
    %27 = vector.shape_cast %24 : vector<8x8xf32> to vector<1x8x8xf32>
    tpu.vector_store %arg13[%c3, %c0_15, %c0_16], %27 {strides = array<i32>} : memref<4x8x8xf32, #tpu.memory_space<vmem>>, vector<1x8x8xf32>,
    %c0_i32_17 = arith.constant 0 : i32
    %c4_i32 = arith.constant 4 : i32
    %28 = arith.addi %c0_i32_17, %c4_i32 : i32
    %c1_i32 = arith.constant 1 : i32
    scf.for %arg18 = %c0_i32_17 to %28 step %c1_i32  : i32 {
      %73 = arith.index_cast %arg18 : i32 to index
      %c0_55 = arith.constant 0 : index
      %c0_56 = arith.constant 0 : index
      %74 = vector.load %arg13[%73, %c0_55, %c0_56] : memref<4x8x8xf32, #tpu.memory_space<vmem>>, vector<1x8x8xf32>
      %75 = vector.shape_cast %74 : vector<1x8x8xf32> to vector<8x8xf32>
      %76 = arith.index_cast %arg18 : i32 to index
      %c0_57 = arith.constant 0 : index
      %c0_58 = arith.constant 0 : index
      %77 = vector.load %arg14[%76, %c0_57, %c0_58] : memref<4x8x8xf32, #tpu.memory_space<vmem>>, vector<1x8x8xf32>
      %78 = vector.shape_cast %77 : vector<1x8x8xf32> to vector<8x8xf32>
      %79 = arith.index_cast %arg18 : i32 to index
      %c0_59 = arith.constant 0 : index
      %c0_60 = arith.constant 0 : index
      %80 = vector.load %arg15[%79, %c0_59, %c0_60] : memref<4x8x8xf32, #tpu.memory_space<vmem>>, vector<1x8x8xf32>
      %81 = vector.shape_cast %80 : vector<1x8x8xf32> to vector<8x8xf32>
      %cst_61 = arith.constant dense<0.000000e+00> : vector<8x8xf32>
      %82 = tpu.matmul %75, %78, %cst_61 {dimension_numbers = #tpu.dot_dimension_numbers<[1], [1], [0], [0], [0, 0, 1, 0], [], []>} : vector<8x8xf32>, vector<8x8xf32>, vector<8x8xf32> -> vector<8x8xf32>
      %cst_62 = arith.constant dense<0xFF800000> : vector<8xf32>
      %83 = vector.multi_reduction <maximumf>, %82, %cst_62 [1] : vector<8x8xf32> to vector<8xf32>
      %84 = vector.shape_cast %83 : vector<8xf32> to vector<8x1xf32>
      %85 = vector.broadcast %84 : vector<8x1xf32> to vector<8x8xf32>
      %86 = arith.subf %82, %85 : vector<8x8xf32>
      %87 = math.exp %86 : vector<8x8xf32>
      %cst_63 = arith.constant dense<0.000000e+00> : vector<8xf32>
      %88 = vector.multi_reduction <add>, %87, %cst_63 [1] : vector<8x8xf32> to vector<8xf32>
      %89 = vector.shape_cast %88 : vector<8xf32> to vector<8x1xf32>
      %90 = tpu.reciprocal %89 {approx = true} : vector<8x1xf32> -> vector<8x1xf32>
      %91 = arith.mulf %89, %90 : vector<8x1xf32>
      %cst_64 = arith.constant 2.000000e+00 : f32
      %92 = vector.broadcast %cst_64 : f32 to vector<8x1xf32>
      %93 = arith.subf %92, %91 : vector<8x1xf32>
      %94 = arith.mulf %90, %93 : vector<8x1xf32>
      %95 = vector.broadcast %94 : vector<8x1xf32> to vector<8x8xf32>
      %96 = arith.mulf %87, %95 : vector<8x8xf32>
      %cst_65 = arith.constant dense<0.000000e+00> : vector<8x8xf32>
      %97 = tpu.matmul %96, %81, %cst_65 {dimension_numbers = #tpu.dot_dimension_numbers<[1], [0], [0], [1], [0, 0, 1, 1], [], []>} : vector<8x8xf32>, vector<8x8xf32>, vector<8x8xf32> -> vector<8x8xf32>
      %98 = arith.index_cast %arg18 : i32 to index
      %c0_66 = arith.constant 0 : index
      %c0_67 = arith.constant 0 : index
      %99 = vector.load %arg16[%98, %c0_66, %c0_67] : memref<4x8x8xf32, #tpu.memory_space<vmem>>, vector<1x8x8xf32>
      %100 = vector.shape_cast %99 : vector<1x8x8xf32> to vector<8x8xf32>
      %101 = vector.shape_cast %97 : vector<8x8xf32> to vector<1x8x8xf32>
      tpu.vector_store %arg16[%98, %c0_66, %c0_67], %101 {strides = array<i32>} : memref<4x8x8xf32, #tpu.memory_space<vmem>>, vector<1x8x8xf32>,
    }
    %c4_i32_18 = arith.constant 4 : i32
    %c0_19 = arith.constant 0 : index
    %c0_20 = arith.constant 0 : index
    %c0_21 = arith.constant 0 : index
    %29 = vector.load %arg16[%c0_19, %c0_20, %c0_21] : memref<4x8x8xf32, #tpu.memory_space<vmem>>, vector<1x8x8xf32>
    %30 = vector.shape_cast %29 : vector<1x8x8xf32> to vector<8x8xf32>
    %c0_22 = arith.constant 0 : index
    %c0_23 = arith.constant 0 : index
    %31 = vector.load %arg17[%c0_22, %c0_23] : memref<8x32xf32, #tpu.memory_space<vmem>>, vector<8x8xf32>
    tpu.vector_store %arg17[%c0_22, %c0_23], %30 {strides = array<i32>} : memref<8x32xf32, #tpu.memory_space<vmem>>, vector<8x8xf32>,
    %c1_24 = arith.constant 1 : index
    %c0_25 = arith.constant 0 : index
    %c0_26 = arith.constant 0 : index
    %32 = vector.load %arg16[%c1_24, %c0_25, %c0_26] : memref<4x8x8xf32, #tpu.memory_space<vmem>>, vector<1x8x8xf32>
    %33 = vector.shape_cast %32 : vector<1x8x8xf32> to vector<8x8xf32>
    %c0_27 = arith.constant 0 : index
    %c8 = arith.constant 8 : index
    %34 = vector.load %arg17[%c0_27, %c8] : memref<8x32xf32, #tpu.memory_space<vmem>>, vector<8x8xf32>
    tpu.vector_store %arg17[%c0_27, %c8], %33 {strides = array<i32>} : memref<8x32xf32, #tpu.memory_space<vmem>>, vector<8x8xf32>,
    %c2_28 = arith.constant 2 : index
    %c0_29 = arith.constant 0 : index
    %c0_30 = arith.constant 0 : index
    %35 = vector.load %arg16[%c2_28, %c0_29, %c0_30] : memref<4x8x8xf32, #tpu.memory_space<vmem>>, vector<1x8x8xf32>
    %36 = vector.shape_cast %35 : vector<1x8x8xf32> to vector<8x8xf32>
    %c0_31 = arith.constant 0 : index
    %c16 = arith.constant 16 : index
    %37 = vector.load %arg17[%c0_31, %c16] : memref<8x32xf32, #tpu.memory_space<vmem>>, vector<8x8xf32>
    tpu.vector_store %arg17[%c0_31, %c16], %36 {strides = array<i32>} : memref<8x32xf32, #tpu.memory_space<vmem>>, vector<8x8xf32>,
    %c3_32 = arith.constant 3 : index
    %c0_33 = arith.constant 0 : index
    %c0_34 = arith.constant 0 : index
    %38 = vector.load %arg16[%c3_32, %c0_33, %c0_34] : memref<4x8x8xf32, #tpu.memory_space<vmem>>, vector<1x8x8xf32>
    %39 = vector.shape_cast %38 : vector<1x8x8xf32> to vector<8x8xf32>
    %c0_35 = arith.constant 0 : index
    %c24 = arith.constant 24 : index
    %40 = vector.load %arg17[%c0_35, %c24] : memref<8x32xf32, #tpu.memory_space<vmem>>, vector<8x8xf32>
    tpu.vector_store %arg17[%c0_35, %c24], %39 {strides = array<i32>} : memref<8x32xf32, #tpu.memory_space<vmem>>, vector<8x8xf32>,
    %c0_36 = arith.constant 0 : index
    %c0_37 = arith.constant 0 : index
    %41 = vector.load %arg17[%c0_36, %c0_37] : memref<8x32xf32, #tpu.memory_space<vmem>>, vector<8x32xf32>
    %c0_38 = arith.constant 0 : index
    %c0_39 = arith.constant 0 : index
    %42 = vector.load %arg8[%c0_38, %c0_39] : memref<32x32xf32, #tpu.memory_space<vmem>>, vector<32x32xf32>
    %cst_40 = arith.constant dense<0.000000e+00> : vector<8x32xf32>
    %43 = tpu.matmul %41, %42, %cst_40 {dimension_numbers = #tpu.dot_dimension_numbers<[1], [0], [0], [1], [0, 0, 1, 1], [], []>} : vector<8x32xf32>, vector<32x32xf32>, vector<8x32xf32> -> vector<8x32xf32>
    %c0_41 = arith.constant 0 : index
    %c0_42 = arith.constant 0 : index
    %44 = vector.load %arg9[%c0_41, %c0_42] : memref<1x32xf32, #tpu.memory_space<vmem>>, vector<1x32xf32>
    %45 = vector.broadcast %44 : vector<1x32xf32> to vector<8x32xf32>
    %46 = arith.addf %43, %45 : vector<8x32xf32>
    %47 = arith.addf %46, %4 : vector<8x32xf32>
    %cst_43 = arith.constant dense<0.000000e+00> : vector<8xf32>
    %48 = vector.multi_reduction <add>, %47, %cst_43 [1] : vector<8x32xf32> to vector<8xf32>
    %49 = vector.shape_cast %48 : vector<8xf32> to vector<8x1xf32>
    %cst_44 = arith.constant 3.200000e+01 : f32
    %50 = vector.broadcast %cst_44 : f32 to vector<8x1xf32>
    %51 = arith.divf %49, %50 : vector<8x1xf32>
    %52 = vector.broadcast %51 : vector<8x1xf32> to vector<8x32xf32>
    %53 = arith.subf %47, %52 : vector<8x32xf32>
    %54 = arith.mulf %53, %53 : vector<8x32xf32>
    %cst_45 = arith.constant dense<0.000000e+00> : vector<8xf32>
    %55 = vector.multi_reduction <add>, %54, %cst_45 [1] : vector<8x32xf32> to vector<8xf32>
    %56 = vector.shape_cast %55 : vector<8xf32> to vector<8x1xf32>
    %cst_46 = arith.constant 3.200000e+01 : f32
    %57 = vector.broadcast %cst_46 : f32 to vector<8x1xf32>
    %58 = arith.divf %56, %57 : vector<8x1xf32>
    %cst_47 = arith.constant 9.99999996E-13 : f32
    %59 = vector.broadcast %cst_47 : f32 to vector<8x1xf32>
    %60 = arith.addf %58, %59 : vector<8x1xf32>
    %61 = math.rsqrt %60 : vector<8x1xf32>
    %62 = vector.broadcast %61 : vector<8x1xf32> to vector<8x32xf32>
    %63 = arith.mulf %53, %62 : vector<8x32xf32>
    %c0_48 = arith.constant 0 : index
    %c0_49 = arith.constant 0 : index
    %64 = vector.load %arg10[%c0_48, %c0_49] : memref<1x32xf32, #tpu.memory_space<vmem>>, vector<1x32xf32>
    %65 = vector.broadcast %64 : vector<1x32xf32> to vector<8x32xf32>
    %66 = arith.mulf %63, %65 : vector<8x32xf32>
    %c0_50 = arith.constant 0 : index
    %c0_51 = arith.constant 0 : index
    %67 = vector.load %arg11[%c0_50, %c0_51] : memref<1x32xf32, #tpu.memory_space<vmem>>, vector<1x32xf32>
    %68 = vector.broadcast %67 : vector<1x32xf32> to vector<8x32xf32>
    %69 = arith.addf %66, %68 : vector<8x32xf32>
    %c0_52 = arith.constant 0 : index
    %c0_53 = arith.constant 0 : index
    %c0_54 = arith.constant 0 : index
    %70 = vector.load %arg12[%c0_52, %c0_53, %c0_54] : memref<1x8x32xf32, #tpu.memory_space<vmem>>, vector<1x8x32xf32>
    %71 = vector.shape_cast %70 : vector<1x8x32xf32> to vector<8x32xf32>
    %72 = vector.shape_cast %69 : vector<8x32xf32> to vector<1x8x32xf32>
    tpu.vector_store %arg12[%c0_52, %c0_53, %c0_54], %72 {strides = array<i32>} : memref<1x8x32xf32, #tpu.memory_space<vmem>>, vector<1x8x32xf32>,
    return
  }
  func.func @transform_0(%arg0: i32, %arg1: i32) -> (i32, i32, i32) {
    %c0_i32 = arith.constant 0 : i32
    %c0_i32_0 = arith.constant 0 : i32
    return %arg0, %arg1, %c0_i32 : i32, i32, i32
  }
  func.func @transform_1(%arg0: i32, %arg1: i32) -> (i32, i32, i32) {
    %c0_i32 = arith.constant 0 : i32
    %c0_i32_0 = arith.constant 0 : i32
    %c0_i32_1 = arith.constant 0 : i32
    return %arg0, %c0_i32, %c0_i32_0 : i32, i32, i32
  }
  func.func @transform_2(%arg0: i32, %arg1: i32) -> (i32, i32) {
    %c0_i32 = arith.constant 0 : i32
    %c0_i32_0 = arith.constant 0 : i32
    %c0_i32_1 = arith.constant 0 : i32
    return %c0_i32, %c0_i32_0 : i32, i32
  }
  func.func @transform_3(%arg0: i32, %arg1: i32) -> (i32, i32) {
    %c0_i32 = arith.constant 0 : i32
    %c0_i32_0 = arith.constant 0 : i32
    %c0_i32_1 = arith.constant 0 : i32
    return %c0_i32, %c0_i32_0 : i32, i32
  }
  func.func @transform_4(%arg0: i32, %arg1: i32) -> (i32, i32) {
    %c0_i32 = arith.constant 0 : i32
    %c0_i32_0 = arith.constant 0 : i32
    %c0_i32_1 = arith.constant 0 : i32
    return %c0_i32, %c0_i32_0 : i32, i32
  }
  func.func @transform_5(%arg0: i32, %arg1: i32) -> (i32, i32) {
    %c0_i32 = arith.constant 0 : i32
    %c0_i32_0 = arith.constant 0 : i32
    %c0_i32_1 = arith.constant 0 : i32
    return %c0_i32, %c0_i32_0 : i32, i32
  }
  func.func @transform_6(%arg0: i32, %arg1: i32) -> (i32, i32) {
    %c0_i32 = arith.constant 0 : i32
    %c0_i32_0 = arith.constant 0 : i32
    %c0_i32_1 = arith.constant 0 : i32
    return %c0_i32, %c0_i32_0 : i32, i32
  }
  func.func @transform_7(%arg0: i32, %arg1: i32) -> (i32, i32) {
    %c0_i32 = arith.constant 0 : i32
    %c0_i32_0 = arith.constant 0 : i32
    %c0_i32_1 = arith.constant 0 : i32
    return %c0_i32, %c0_i32_0 : i32, i32
  }
  func.func @transform_8(%arg0: i32, %arg1: i32) -> (i32, i32) {
    %c0_i32 = arith.constant 0 : i32
    %c0_i32_0 = arith.constant 0 : i32
    %c0_i32_1 = arith.constant 0 : i32
    return %c0_i32, %c0_i32_0 : i32, i32
  }
  func.func @transform_9(%arg0: i32, %arg1: i32) -> (i32, i32) {
    %c0_i32 = arith.constant 0 : i32
    %c0_i32_0 = arith.constant 0 : i32
    %c0_i32_1 = arith.constant 0 : i32
    return %c0_i32, %c0_i32_0 : i32, i32
  }
  func.func @transform_10(%arg0: i32, %arg1: i32) -> (i32, i32, i32) {
    %c0_i32 = arith.constant 0 : i32
    %c0_i32_0 = arith.constant 0 : i32
    return %arg0, %arg1, %c0_i32 : i32, i32, i32
  }
}

</mosaic_0001>

<llo_original>
// kernel: tpu_custom_call.1
$region0: #{tpu_custom_call.1}
  #allocation0 [shape = 'u32[]', space=smem, size = 0x4, offset = 0x4, fixed_abs, tag = 'smem constant byte address 0x4 - core index']
  #allocation1 [shape = 'u32[144,128]{1,0:T(1,128)}', space=vmem, size = 0x12000, scoped, tag = 'internal scratch']
  #allocation2 [shape = 'f32[4,8,8]{2,1,0:T(8,128)}', space=vmem, size = 0x4000, scoped, tag = 'scratch operand']
  #allocation3 [shape = 'f32[4,8,8]{2,1,0:T(8,128)}', space=vmem, size = 0x4000, scoped, tag = 'scratch operand']
  #allocation4 [shape = 'f32[4,8,8]{2,1,0:T(8,128)}', space=vmem, size = 0x4000, scoped, tag = 'scratch operand']
  #allocation5 [shape = 'f32[4,8,8]{2,1,0:T(8,128)}', space=vmem, size = 0x4000, scoped, tag = 'scratch operand']
  #allocation6 [shape = 'f32[8,32]{1,0:T(8,128)}', space=vmem, size = 0x1000, scoped, tag = 'scratch operand']
  %s0 = inlined_call_operand.hbm [shape: f32[2,8,32], index: 0, kind: input, shape index: {}]
  %s1 = inlined_call_operand.hbm [shape: f32[2,8,32], index: 1, kind: input, shape index: {}]
  %s2 = inlined_call_operand.hbm [shape: f32[32,32], index: 2, kind: input, shape index: {}]
  %s3 = inlined_call_operand.vmem [shape: f32[1,32], index: 3, kind: input, shape index: {}]
  %s4 = inlined_call_operand.hbm [shape: f32[32,64], index: 4, kind: input, shape index: {}]
  %s5 = inlined_call_operand.vmem [shape: f32[1,64], index: 5, kind: input, shape index: {}]
  %s6 = inlined_call_operand.hbm [shape: f32[32,32], index: 6, kind: input, shape index: {}]
  %s7 = inlined_call_operand.vmem [shape: f32[1,32], index: 7, kind: input, shape index: {}]
  %s8 = inlined_call_operand.vmem [shape: f32[1,32], index: 8, kind: input, shape index: {}]
  %s9 = inlined_call_operand.vmem [shape: f32[1,32], index: 9, kind: input, shape index: {}]
  %s10 = inlined_call_operand.hbm [shape: f32[2,8,32], index: 10, kind: output, shape index: {}]
  %s11 = sld [smem:[#allocation0]]
  $region104: #{tpu_custom_call.1} parent=0
    _
  %s13 = ssub.s32 1, %s11
  %s14 = scalar_select 0, %s13, %s11
  $region1: #{tpu_custom_call.1} parent=0
    #allocation7 [shape = 'u8[8192]{0}', space=vmem, size = 0x2000, scoped, tag = 'input window, operand 0']
    #allocation8 [shape = 's32[2]{0}', space=sflag, size = 0x8, scoped, tag = 'scoped memory for tpu_custom_call.1']
    #allocation9 [shape = 's32[2]{0}', space=sflag, size = 0x8, scoped, tag = 'scoped memory for tpu_custom_call.1']
    #allocation10 [shape = 'u8[8192]{0}', space=vmem, size = 0x2000, scoped, tag = 'input window, operand 1']
    #allocation11 [shape = 's32[2]{0}', space=sflag, size = 0x8, scoped, tag = 'scoped memory for tpu_custom_call.1']
    #allocation12 [shape = 'u8[16384]{0}', space=vmem, size = 0x4000, scoped, tag = 'input window, operand 2, single buffered']
    #allocation13 [shape = 'u8[16384]{0}', space=vmem, size = 0x4000, scoped, tag = 'input window, operand 4, single buffered']
    #allocation14 [shape = 's32[1]{0}', space=sflag, size = 0x4, scoped, tag = 'scoped memory for tpu_custom_call.1']
    #allocation15 [shape = 'u8[16384]{0}', space=vmem, size = 0x4000, scoped, tag = 'input window, operand 6, single buffered']
    #allocation16 [shape = 'u8[8192]{0}', space=vmem, size = 0x2000, scoped, tag = 'output window, operand 0']
    %15 = vsyncpa [#allocation8], 0
    %s16 = scalar_lea.sflag [#allocation8], 1
    %17 = vsyncpa %s16, 0
    %18 = vsyncpa [#allocation11], 0
    %s19 = scalar_lea.sflag [#allocation11], 1
    %20 = vsyncpa %s19, 0
    %21 = vsyncpa [#allocation14], 0
    %22 = vsyncpa [#allocation9], 0
    %s23 = scalar_lea.sflag [#allocation9], 1
    %24 = vsyncpa %s23, 0
    loop: start=0, step=1, limit=4
    $region2: #{tpu_custom_call.1} parent=1 // loop_pre_header
      _
    $region3: #{tpu_custom_call.1} parent=1 // loop_header
      %s26 = sphi 0, %s30
      %p27 = scmp.ge.s32.totalorder %s26, 4
      %s33 = sphi 0, %s45
      %s34 = sphi 0, %s41
      %s35 = sphi 0, %s33
      %s36 = sphi 0, %s34
      %s37 = sphi 0, %s35
      %s38 = sphi 0, %s36
      %s50 = sphi 0, %s52
      %s53 = sphi 0, %s50
      %s54 = sphi 0, %s53
      %s70 = sphi 0, %s54
      %s76 = sphi 0, %s78
      %s79 = sphi 0, %s76
      %s80 = sphi 0, %s79
      %s96 = sphi 0, %s80
      %s100 = sphi 0, %s100
      %s102 = sphi 0, %s100
      %s103 = sphi 0, %s102
      %s117 = sphi 0, %s103
      %s121 = sphi 0, %s121
      %s123 = sphi 0, %s121
      %s124 = sphi 0, %s123
      %s138 = sphi 0, %s124
      %s142 = sphi 0, %s142
      %s144 = sphi 0, %s142
      %s145 = sphi 0, %s144
      %s159 = sphi 0, %s145
      %s163 = sphi 0, %s163
      %s165 = sphi 0, %s163
      %s166 = sphi 0, %s165
      %s180 = sphi 0, %s166
      %s184 = sphi 0, %s184
      %s186 = sphi 0, %s184
      %s187 = sphi 0, %s186
      %s201 = sphi 0, %s187
      %s205 = sphi 0, %s205
      %s207 = sphi 0, %s205
      %s208 = sphi 0, %s207
      %s222 = sphi 0, %s208
      %s226 = sphi 0, %s226
      %s228 = sphi 0, %s226
      %s229 = sphi 0, %s228
      %s243 = sphi 0, %s229
      %s247 = sphi 0, %s247
      %s249 = sphi 0, %s247
      %s250 = sphi 0, %s249
      %s264 = sphi 0, %s250
      %s272 = sphi 0, %s274
      %s275 = sphi 0, %s272
      %s276 = sphi 0, %s275
      %s292 = sphi 0, %s276
    $region4: #{tpu_custom_call.1} parent=1 // loop_header_branch
      %29 = sbr.rel (%p27) target = $region8
    $region5: #{tpu_custom_call.1} parent=1 // loop_body
      %s31 = ssub.s32 %s26, 1
      %s32 = ssub.s32 %s26, 2
      %s39 = sadd.s32 1, %s34
      %p40 = scmp.ge.s32.totalorder %s39, 1
      %s41 = scalar_select %p40, 0, %s39
      %s42 = sadd.s32 1, %s33
      %s43 = scalar_select %p40, %s42, %s33
      %p44 = scmp.ge.s32.totalorder %s43, 2
      %s45 = scalar_select %p44, 0, %s43
      %s46 = ssub.s32 %s33, %s45
      %s47 = ssub.s32 %s34, %s41
      %s48 = sor.u32 %s46, %s47
      %p49 = scmp.eq.s32.totalorder %s48, 0
      %s51 = sadd.s32 %s50, 1
      %s52 = scalar_select %p49, %s50, %s51
      %p55 = pneg %p49
      %p56 = scmp.eq.s32.totalorder %s26, 1
      %p57 = por %p55, %p56
      %p58 = scmp.ne.s32.totalorder %s50, %s53
      %p59 = scmp.eq.s32.totalorder %s26, 0
      %p60 = por %p58, %p59
      %p61 = scmp.ne.s32.totalorder %s50, %s53
      %p62 = scmp.eq.s32.totalorder %s31, 1
      %p63 = por %p61, %p62
      %p64 = scmp.ne.s32.totalorder %s53, %s54
      %p65 = scmp.eq.s32.totalorder %s31, 0
      %p66 = por %p64, %p65
      %p67 = scmp.ne.s32.totalorder %s53, %s54
      %p68 = scmp.eq.s32.totalorder %s32, 1
      %p69 = por %p67, %p68
      %p71 = scmp.ne.s32.totalorder %s54, %s70
      %p72 = scmp.eq.s32.totalorder %s32, 0
      %p73 = por %p71, %p72
      %s74 = ssub.s32 %s33, %s45
      %p75 = scmp.eq.s32.totalorder %s74, 0
      %s77 = sadd.s32 %s76, 1
      %s78 = scalar_select %p75, %s76, %s77
      %p81 = pneg %p75
      %p82 = scmp.eq.s32.totalorder %s26, 1
      %p83 = por %p81, %p82
      %p84 = scmp.ne.s32.totalorder %s76, %s79
      %p85 = scmp.eq.s32.totalorder %s26, 0
      %p86 = por %p84, %p85
      %p87 = scmp.ne.s32.totalorder %s76, %s79
      %p88 = scmp.eq.s32.totalorder %s31, 1
      %p89 = por %p87, %p88
      %p90 = scmp.ne.s32.totalorder %s79, %s80
      %p91 = scmp.eq.s32.totalorder %s31, 0
      %p92 = por %p90, %p91
      %p93 = scmp.ne.s32.totalorder %s79, %s80
      %p94 = scmp.eq.s32.totalorder %s32, 1
      %p95 = por %p93, %p94
      %p97 = scmp.ne.s32.totalorder %s80, %s96
      %p98 = scmp.eq.s32.totalorder %s32, 0
      %p99 = por %p97, %p98
      %s101 = sadd.s32 %s100, 1
      %p104 = scmp.eq.s32.totalorder %s26, 1
      %p105 = scmp.ne.s32.totalorder %s100, %s102
      %p106 = scmp.eq.s32.totalorder %s26, 0
      %p107 = por %p105, %p106
      %p108 = scmp.ne.s32.totalorder %s100, %s102
      %p109 = scmp.eq.s32.totalorder %s31, 1
      %p110 = por %p108, %p109
      %p111 = scmp.ne.s32.totalorder %s102, %s103
      %p112 = scmp.eq.s32.totalorder %s31, 0
      %p113 = por %p111, %p112
      %p114 = scmp.ne.s32.totalorder %s102, %s103
      %p115 = scmp.eq.s32.totalorder %s32, 1
      %p116 = por %p114, %p115
      %p118 = scmp.ne.s32.totalorder %s103, %s117
      %p119 = scmp.eq.s32.totalorder %s32, 0
      %p120 = por %p118, %p119
      %s122 = sadd.s32 %s121, 1
      %p125 = scmp.eq.s32.totalorder %s26, 1
      %p126 = scmp.ne.s32.totalorder %s121, %s123
      %p127 = scmp.eq.s32.totalorder %s26, 0
      %p128 = por %p126, %p127
      %p129 = scmp.ne.s32.totalorder %s121, %s123
      %p130 = scmp.eq.s32.totalorder %s31, 1
      %p131 = por %p129, %p130
      %p132 = scmp.ne.s32.totalorder %s123, %s124
      %p133 = scmp.eq.s32.totalorder %s31, 0
      %p134 = por %p132, %p133
      %p135 = scmp.ne.s32.totalorder %s123, %s124
      %p136 = scmp.eq.s32.totalorder %s32, 1
      %p137 = por %p135, %p136
      %p139 = scmp.ne.s32.totalorder %s124, %s138
      %p140 = scmp.eq.s32.totalorder %s32, 0
      %p141 = por %p139, %p140
      %s143 = sadd.s32 %s142, 1
      %p146 = scmp.eq.s32.totalorder %s26, 1
      %p147 = scmp.ne.s32.totalorder %s142, %s144
      %p148 = scmp.eq.s32.totalorder %s26, 0
      %p149 = por %p147, %p148
      %p150 = scmp.ne.s32.totalorder %s142, %s144
      %p151 = scmp.eq.s32.totalorder %s31, 1
      %p152 = por %p150, %p151
      %p153 = scmp.ne.s32.totalorder %s144, %s145
      %p154 = scmp.eq.s32.totalorder %s31, 0
      %p155 = por %p153, %p154
      %p156 = scmp.ne.s32.totalorder %s144, %s145
      %p157 = scmp.eq.s32.totalorder %s32, 1
      %p158 = por %p156, %p157
      %p160 = scmp.ne.s32.totalorder %s145, %s159
      %p161 = scmp.eq.s32.totalorder %s32, 0
      %p162 = por %p160, %p161
      %s164 = sadd.s32 %s163, 1
      %p167 = scmp.eq.s32.totalorder %s26, 1
      %p168 = scmp.ne.s32.totalorder %s163, %s165
      %p169 = scmp.eq.s32.totalorder %s26, 0
      %p170 = por %p168, %p169
      %p171 = scmp.ne.s32.totalorder %s163, %s165
      %p172 = scmp.eq.s32.totalorder %s31, 1
      %p173 = por %p171, %p172
      %p174 = scmp.ne.s32.totalorder %s165, %s166
      %p175 = scmp.eq.s32.totalorder %s31, 0
      %p176 = por %p174, %p175
      %p177 = scmp.ne.s32.totalorder %s165, %s166
      %p178 = scmp.eq.s32.totalorder %s32, 1
      %p179 = por %p177, %p178
      %p181 = scmp.ne.s32.totalorder %s166, %s180
      %p182 = scmp.eq.s32.totalorder %s32, 0
      %p183 = por %p181, %p182
      %s185 = sadd.s32 %s184, 1
      %p188 = scmp.eq.s32.totalorder %s26, 1
      %p189 = scmp.ne.s32.totalorder %s184, %s186
      %p190 = scmp.eq.s32.totalorder %s26, 0
      %p191 = por %p189, %p190
      %p192 = scmp.ne.s32.totalorder %s184, %s186
      %p193 = scmp.eq.s32.totalorder %s31, 1
      %p194 = por %p192, %p193
      %p195 = scmp.ne.s32.totalorder %s186, %s187
      %p196 = scmp.eq.s32.totalorder %s31, 0
      %p197 = por %p195, %p196
      %p198 = scmp.ne.s32.totalorder %s186, %s187
      %p199 = scmp.eq.s32.totalorder %s32, 1
      %p200 = por %p198, %p199
      %p202 = scmp.ne.s32.totalorder %s187, %s201
      %p203 = scmp.eq.s32.totalorder %s32, 0
      %p204 = por %p202, %p203
      %s206 = sadd.s32 %s205, 1
      %p209 = scmp.eq.s32.totalorder %s26, 1
      %p210 = scmp.ne.s32.totalorder %s205, %s207
      %p211 = scmp.eq.s32.totalorder %s26, 0
      %p212 = por %p210, %p211
      %p213 = scmp.ne.s32.totalorder %s205, %s207
      %p214 = scmp.eq.s32.totalorder %s31, 1
      %p215 = por %p213, %p214
      %p216 = scmp.ne.s32.totalorder %s207, %s208
      %p217 = scmp.eq.s32.totalorder %s31, 0
      %p218 = por %p216, %p217
      %p219 = scmp.ne.s32.totalorder %s207, %s208
      %p220 = scmp.eq.s32.totalorder %s32, 1
      %p221 = por %p219, %p220
      %p223 = scmp.ne.s32.totalorder %s208, %s222
      %p224 = scmp.eq.s32.totalorder %s32, 0
      %p225 = por %p223, %p224
      %s227 = sadd.s32 %s226, 1
      %p230 = scmp.eq.s32.totalorder %s26, 1
      %p231 = scmp.ne.s32.totalorder %s226, %s228
      %p232 = scmp.eq.s32.totalorder %s26, 0
      %p233 = por %p231, %p232
      %p234 = scmp.ne.s32.totalorder %s226, %s228
      %p235 = scmp.eq.s32.totalorder %s31, 1
      %p236 = por %p234, %p235
      %p237 = scmp.ne.s32.totalorder %s228, %s229
      %p238 = scmp.eq.s32.totalorder %s31, 0
      %p239 = por %p237, %p238
      %p240 = scmp.ne.s32.totalorder %s228, %s229
      %p241 = scmp.eq.s32.totalorder %s32, 1
      %p242 = por %p240, %p241
      %p244 = scmp.ne.s32.totalorder %s229, %s243
      %p245 = scmp.eq.s32.totalorder %s32, 0
      %p246 = por %p244, %p245
      %s248 = sadd.s32 %s247, 1
      %p251 = scmp.eq.s32.totalorder %s26, 1
      %p252 = scmp.ne.s32.totalorder %s247, %s249
      %p253 = scmp.eq.s32.totalorder %s26, 0
      %p254 = por %p252, %p253
      %p255 = scmp.ne.s32.totalorder %s247, %s249
      %p256 = scmp.eq.s32.totalorder %s31, 1
      %p257 = por %p255, %p256
      %p258 = scmp.ne.s32.totalorder %s249, %s250
      %p259 = scmp.eq.s32.totalorder %s31, 0
      %p260 = por %p258, %p259
      %p261 = scmp.ne.s32.totalorder %s249, %s250
      %p262 = scmp.eq.s32.totalorder %s32, 1
      %p263 = por %p261, %p262
      %p265 = scmp.ne.s32.totalorder %s250, %s264
      %p266 = scmp.eq.s32.totalorder %s32, 0
      %p267 = por %p265, %p266
      %s268 = ssub.s32 %s33, %s45
      %s269 = ssub.s32 %s34, %s41
      %s270 = sor.u32 %s268, %s269
      %p271 = scmp.eq.s32.totalorder %s270, 0
      %s273 = sadd.s32 %s272, 1
      %s274 = scalar_select %p271, %s272, %s273
      %p277 = pneg %p271
      %p278 = scmp.eq.s32.totalorder %s26, 1
      %p279 = por %p277, %p278
      %p280 = scmp.ne.s32.totalorder %s272, %s275
      %p281 = scmp.eq.s32.totalorder %s26, 0
      %p282 = por %p280, %p281
      %p283 = scmp.ne.s32.totalorder %s272, %s275
      %p284 = scmp.eq.s32.totalorder %s31, 1
      %p285 = por %p283, %p284
      %p286 = scmp.ne.s32.totalorder %s275, %s276
      %p287 = scmp.eq.s32.totalorder %s31, 0
      %p288 = por %p286, %p287
      %p289 = scmp.ne.s32.totalorder %s275, %s276
      %p290 = scmp.eq.s32.totalorder %s32, 1
      %p291 = por %p289, %p290
      %p293 = scmp.ne.s32.totalorder %s276, %s292
      %p294 = scmp.eq.s32.totalorder %s32, 0
      %p295 = por %p293, %p294
      %p296 = scmp.le.s32.totalorder 1, %s26
      %p297 = scmp.lt.s32.totalorder %s26, 3
      %p298 = pnand %p296, %p297
      %p299 = pneg %p298
      // Predicated region
      $region9: #{tpu_custom_call.1} parent=5 // pred_check
        _
      $region10: #{tpu_custom_call.1} parent=5 // pred_check_branch
        %301 = sbr.rel (%p298) target = $region12
      $region11: #{tpu_custom_call.1} parent=5 // pred_region
        %s302 = ssub.s32 %s26, 1
        // Predicated region
        $region13: #{tpu_custom_call.1} parent=11 // pred_check
          %p303 = pneg %p113
        $region14: #{tpu_custom_call.1} parent=11 // pred_check_branch
          %305 = sbr.rel (%p303) target = $region16
        $region15: #{tpu_custom_call.1} parent=11 // pred_region
          %s307 = ssub.s32 512, 512
          %308 = vsyncadd [#allocation11], %s307
          %s309 = sshll.u32 [#allocation12], 4
          %s310 = int_to_ptr.vmem [resolvable:$true] %s309
          %315 = dma.hbm_to_vmem [thread:$0]  %s2, 512, %s310, [#allocation11], 128, 128, 8
        $region16: #{tpu_custom_call.1} parent=11 // pred_fallthru
          _
        // Predicated region
        $region17: #{tpu_custom_call.1} parent=11 // pred_check
          %p316 = pneg %p134
        $region18: #{tpu_custom_call.1} parent=11 // pred_check_branch
          %318 = sbr.rel (%p316) target = $region20
        $region19: #{tpu_custom_call.1} parent=11 // pred_region
          _
        $region20: #{tpu_custom_call.1} parent=11 // pred_fallthru
          _
        // Predicated region
        $region21: #{tpu_custom_call.1} parent=11 // pred_check
          %p319 = pneg %p155
        $region22: #{tpu_custom_call.1} parent=11 // pred_check_branch
          %321 = sbr.rel (%p319) target = $region24
        $region23: #{tpu_custom_call.1} parent=11 // pred_region
          %s323 = ssub.s32 512, 512
          %324 = vsyncadd [#allocation14], %s323
          %s325 = sshll.u32 [#allocation13], 4
          %s326 = int_to_ptr.vmem [resolvable:$true] %s325
          %331 = dma.hbm_to_vmem [thread:$0]  %s4, 512, %s326, [#allocation14], 128, 128, 8
        $region24: #{tpu_custom_call.1} parent=11 // pred_fallthru
          _
        // Predicated region
        $region25: #{tpu_custom_call.1} parent=11 // pred_check
          %p332 = pneg %p176
        $region26: #{tpu_custom_call.1} parent=11 // pred_check_branch
          %334 = sbr.rel (%p332) target = $region28
        $region27: #{tpu_custom_call.1} parent=11 // pred_region
          _
        $region28: #{tpu_custom_call.1} parent=11 // pred_fallthru
          _
        // Predicated region
        $region29: #{tpu_custom_call.1} parent=11 // pred_check
          %p335 = pneg %p197
        $region30: #{tpu_custom_call.1} parent=11 // pred_check_branch
          %337 = sbr.rel (%p335) target = $region32
        $region31: #{tpu_custom_call.1} parent=11 // pred_region
          %s339 = ssub.s32 512, 512
          %340 = vsyncadd [#allocation14], %s339
          %s341 = sshll.u32 [#allocation15], 4
          %s342 = int_to_ptr.vmem [resolvable:$true] %s341
          %347 = dma.hbm_to_vmem [thread:$0]  %s6, 512, %s342, [#allocation14], 128, 128, 8
        $region32: #{tpu_custom_call.1} parent=11 // pred_fallthru
          _
        // Predicated region
        $region33: #{tpu_custom_call.1} parent=11 // pred_check
          %p348 = pneg %p218
        $region34: #{tpu_custom_call.1} parent=11 // pred_check_branch
          %350 = sbr.rel (%p348) target = $region36
        $region35: #{tpu_custom_call.1} parent=11 // pred_region
          _
        $region36: #{tpu_custom_call.1} parent=11 // pred_fallthru
          _
        // Predicated region
        $region37: #{tpu_custom_call.1} parent=11 // pred_check
          %p351 = pneg %p239
        $region38: #{tpu_custom_call.1} parent=11 // pred_check_branch
          %353 = sbr.rel (%p351) target = $region40
        $region39: #{tpu_custom_call.1} parent=11 // pred_region
          _
        $region40: #{tpu_custom_call.1} parent=11 // pred_fallthru
          _
        // Predicated region
        $region41: #{tpu_custom_call.1} parent=11 // pred_check
          %p354 = pneg %p260
        $region42: #{tpu_custom_call.1} parent=11 // pred_check_branch
          %356 = sbr.rel (%p354) target = $region44
        $region43: #{tpu_custom_call.1} parent=11 // pred_region
          _
        $region44: #{tpu_custom_call.1} parent=11 // pred_fallthru
          _
      $region12: #{tpu_custom_call.1} parent=5 // pred_fallthru
        _
      %p357 = scmp.lt.s32.totalorder %s26, 2
      // Predicated region
      $region45: #{tpu_custom_call.1} parent=5 // pred_check
        %p358 = pneg %p357
      $region46: #{tpu_custom_call.1} parent=5 // pred_check_branch
        %360 = sbr.rel (%p358) target = $region48
      $region47: #{tpu_custom_call.1} parent=5 // pred_region
        // Predicated region
        $region49: #{tpu_custom_call.1} parent=47 // pred_check
          %p361 = pneg %p60
        $region50: #{tpu_custom_call.1} parent=47 // pred_check_branch
          %363 = sbr.rel (%p361) target = $region52
        $region51: #{tpu_custom_call.1} parent=47 // pred_region
          %s364 = sand.u32 %s50, 1
          %s365 = scalar_lea.sflag [#allocation8], %s364
          %s366 = sand.u32 %s50, 1
          %s367 = smul.addr %s366, 8
          %s368 = scalar_lea.vmem [#allocation7], %s367
          %s370 = ssub.s32 128, 128
          %371 = vsyncadd %s365, %s370
          %s372 = sadd.s32 %s34, %s33
          %s373 = smul.addr %s372, 128
          %s374 = scalar_lea.hbm %s0, %s373
          %s376 = sshll.u32 %s368, 4
          %s377 = int_to_ptr.vmem [resolvable:$true] %s376
          %379 = dma.hbm_to_vmem [thread:$0]  %s374, 128, %s377, %s365
        $region52: #{tpu_custom_call.1} parent=47 // pred_fallthru
          _
        // Predicated region
        $region53: #{tpu_custom_call.1} parent=47 // pred_check
          %p380 = pneg %p86
        $region54: #{tpu_custom_call.1} parent=47 // pred_check_branch
          %382 = sbr.rel (%p380) target = $region56
        $region55: #{tpu_custom_call.1} parent=47 // pred_region
          %s383 = sand.u32 %s26, 1
          %s384 = scalar_lea.sflag [#allocation11], %s383
          %s385 = sand.u32 %s76, 1
          %s386 = smul.addr %s385, 8
          %s387 = scalar_lea.vmem [#allocation10], %s386
          %s389 = ssub.s32 128, 128
          %390 = vsyncadd %s384, %s389
          %s391 = smul.addr %s33, 128
          %s392 = scalar_lea.hbm %s1, %s391
          %s394 = sshll.u32 %s387, 4
          %s395 = int_to_ptr.vmem [resolvable:$true] %s394
          %397 = dma.hbm_to_vmem [thread:$0]  %s392, 128, %s395, %s384
        $region56: #{tpu_custom_call.1} parent=47 // pred_fallthru
          _
      $region48: #{tpu_custom_call.1} parent=5 // pred_fallthru
        _
      %p398 = scmp.le.s32.totalorder 1, %s26
      %p399 = scmp.lt.s32.totalorder %s26, 3
      %p400 = pnand %p398, %p399
      %p401 = pneg %p400
      // Predicated region
      $region57: #{tpu_custom_call.1} parent=5 // pred_check
        _
      $region58: #{tpu_custom_call.1} parent=5 // pred_check_branch
        %403 = sbr.rel (%p400) target = $region60
      $region59: #{tpu_custom_call.1} parent=5 // pred_region
        %s404 = ssub.s32 %s26, 1
        %s405 = sand.u32 %s53, 1
        %s406 = scalar_lea.sflag [#allocation8], %s405
        %s407 = sand.u32 %s53, 1
        %s408 = smul.addr %s407, 8
        %s409 = scalar_lea.vmem [#allocation7], %s408
        // Predicated region
        $region61: #{tpu_custom_call.1} parent=59 // pred_check
          %p410 = pneg %p66
        $region62: #{tpu_custom_call.1} parent=59 // pred_check_branch
          %412 = sbr.rel (%p410) target = $region64
        $region63: #{tpu_custom_call.1} parent=59 // pred_region
          %413 = dma.done %s406, 128
        $region64: #{tpu_custom_call.1} parent=59 // pred_fallthru
          _
        %s414 = sand.u32 %s31, 1
        %s415 = scalar_lea.sflag [#allocation11], %s414
        %s416 = sand.u32 %s79, 1
        %s417 = smul.addr %s416, 8
        %s418 = scalar_lea.vmem [#allocation10], %s417
        // Predicated region
        $region65: #{tpu_custom_call.1} parent=59 // pred_check
          %p419 = pneg %p92
        $region66: #{tpu_custom_call.1} parent=59 // pred_check_branch
          %421 = sbr.rel (%p419) target = $region68
        $region67: #{tpu_custom_call.1} parent=59 // pred_region
          %422 = dma.done %s415, 128
        $region68: #{tpu_custom_call.1} parent=59 // pred_fallthru
          _
        // Predicated region
        $region69: #{tpu_custom_call.1} parent=59 // pred_check
          %p423 = pneg %p113
        $region70: #{tpu_custom_call.1} parent=59 // pred_check_branch
          %425 = sbr.rel (%p423) target = $region72
        $region71: #{tpu_custom_call.1} parent=59 // pred_region
          %426 = dma.done [#allocation11], 512
        $region72: #{tpu_custom_call.1} parent=59 // pred_fallthru
          _
        // Predicated region
        $region73: #{tpu_custom_call.1} parent=59 // pred_check
          %p427 = pneg %p155
        $region74: #{tpu_custom_call.1} parent=59 // pred_check_branch
          %429 = sbr.rel (%p427) target = $region76
        $region75: #{tpu_custom_call.1} parent=59 // pred_region
          %430 = dma.done [#allocation14], 512
        $region76: #{tpu_custom_call.1} parent=59 // pred_fallthru
          _
        // Predicated region
        $region77: #{tpu_custom_call.1} parent=59 // pred_check
          %p431 = pneg %p197
        $region78: #{tpu_custom_call.1} parent=59 // pred_check_branch
          %433 = sbr.rel (%p431) target = $region80
        $region79: #{tpu_custom_call.1} parent=59 // pred_region
          %434 = dma.done [#allocation14], 512
        $region80: #{tpu_custom_call.1} parent=59 // pred_fallthru
          _
        %s435 = sand.u32 %s53, 1
        %s436 = scalar_lea.sflag [#allocation8], %s435
        %s437 = sand.u32 %s53, 1
        %s438 = smul.addr %s437, 8
        %s439 = scalar_lea.vmem [#allocation7], %s438
        %p440 = pneg %p66
        %p441 = pneg %p63
        %s442 = sand.u32 %s31, 1
        %s443 = scalar_lea.sflag [#allocation11], %s442
        %s444 = sand.u32 %s79, 1
        %s445 = smul.addr %s444, 8
        %s446 = scalar_lea.vmem [#allocation10], %s445
        %p447 = pneg %p92
        %p448 = pneg %p89
        %p449 = pneg %p113
        %p450 = pneg %p110
        %p451 = pneg %p134
        %p452 = pneg %p131
        %p453 = pneg %p155
        %p454 = pneg %p152
        %p455 = pneg %p176
        %p456 = pneg %p173
        %p457 = pneg %p197
        %p458 = pneg %p194
        %p459 = pneg %p218
        %p460 = pneg %p215
        %p461 = pneg %p239
        %p462 = pneg %p236
        %p463 = pneg %p260
        %p464 = pneg %p257
        %p465 = pneg %p288
        %p466 = pneg %p285
        %s467 = sand.u32 %s275, 1
        %s468 = scalar_lea.sflag [#allocation9], %s467
        %s469 = sand.u32 %s275, 1
        %s470 = smul.addr %s469, 8
        %s471 = scalar_lea.vmem [#allocation16], %s470
        %p472 = scmp.eq.s32.totalorder %s36, 0
        // Predicated region
        $region81: #{tpu_custom_call.1} parent=59 // pred_check
          %p473 = pneg %p472
        $region82: #{tpu_custom_call.1} parent=59 // pred_check_branch
          %475 = sbr.rel (%p473) target = $region84
        $region83: #{tpu_custom_call.1} parent=59 // pred_region
          %v476 = vld [vmem:[%s418] sm:$0xff]
          %v477 = vld [vmem:[#allocation13] sm:$0xff]
          %v478 = vld [vmem:[#allocation13 + $0x8] sm:$0xff]
          %v479 = vld [vmem:[#allocation13 + $0x10] sm:$0xff]
          %v480 = vld [vmem:[#allocation13 + $0x18] sm:$0xff]
          %v481 = vld [vmem:[%s5] sm:$0x1]
          %v483 = vlaneseq
          %v484 = vshrl.u32 %v483, 7
          %v485 = vsub.s32 0, %v484
          %v486 = vrot.slane %v481, %v485
          %vm488 = vcmask 261120
          %v490 = vsel %vm488, %v476, 0
          %492 = vmatprep.subr.mxu0 0.0
          %493 = vmatpush1.msra.mxu0 %v477
          %494 = vmatprep.subr.mxu0 0.0
          %495 = vmatpush1.msra.mxu0 %v478
          %496 = vmatprep.subr.mxu0 0.0
          %497 = vmatpush1.msra.mxu0 %v479
          %498 = vmatprep.subr.mxu0 0.0
          %499 = vmatpush1.msra.mxu0 %v480
          %500 = vmatprep.subr.mxu0 0.0
          %501 = vmatpush1.msra.mxu0 0.0
          %502 = vmatprep.subr.mxu0 0.0
          %503 = vmatpush1.msra.mxu0 0.0
          %504 = vmatprep.subr.mxu0 0.0
          %505 = vmatpush1.msra.mxu0 0.0
          %506 = vmatprep.subr.mxu0 0.0
          %507 = vmatpush1.msra.mxu0 0.0
          %508 = vmatprep.subr.mxu0 0.0
          %509 = vmatpush1.msra.mxu0 0.0
          %510 = vmatprep.subr.mxu0 0.0
          %511 = vmatpush1.msra.mxu0 0.0
          %512 = vmatprep.subr.mxu0 0.0
          %513 = vmatpush1.msra.mxu0 0.0
          %514 = vmatprep.subr.mxu0 0.0
          %515 = vmatpush1.msra.mxu0 0.0
          %516 = vmatprep.subr.mxu0 0.0
          %517 = vmatpush1.msra.mxu0 0.0
          %518 = vmatprep.subr.mxu0 0.0
          %519 = vmatpush1.msra.mxu0 0.0
          %520 = vmatprep.subr.mxu0 0.0
          %521 = vmatpush1.msra.mxu0 0.0
          %522 = vmatprep.subr.mxu0 0.0
          %523 = vmatpush1.msra.mxu0 0.0
          %524 = vmatprep.subr.mxu0 0.0
          %525 = vmatpush1.msra.mxu0 0.0
          %526 = vmatprep.subr.mxu0 0.0
          %527 = vmatpush1.msra.mxu0 0.0
          %528 = vmatprep.subr.mxu0 0.0
          %529 = vmatpush1.msra.mxu0 0.0
          %530 = vmatprep.subr.mxu0 0.0
          %531 = vmatpush1.msra.mxu0 0.0
          %532 = vmatprep.subr.mxu0 0.0
          %533 = vmatpush1.msra.mxu0 0.0
          %534 = vmatprep.subr.mxu0 0.0
          %535 = vmatpush1.msra.mxu0 0.0
          %536 = vmatprep.subr.mxu0 0.0
          %537 = vmatpush1.msra.mxu0 0.0
          %538 = vmatprep.subr.mxu0 0.0
          %539 = vmatpush1.msra.mxu0 0.0
          %540 = vmatprep.subr.mxu0 0.0
          %541 = vmatpush1.msra.mxu0 0.0
          %542 = vmatprep.subr.mxu0 0.0
          %543 = vmatpush1.msra.mxu0 0.0
          %544 = vmatprep.subr.mxu0 0.0
          %545 = vmatpush1.msra.mxu0 0.0
          %546 = vmatprep.subr.mxu0 0.0
          %547 = vmatpush1.msra.mxu0 0.0
          %548 = vmatprep.subr.mxu0 0.0
          %549 = vmatpush1.msra.mxu0 0.0
          %550 = vmatprep.subr.mxu0 0.0
          %551 = vmatpush1.msra.mxu0 0.0
          %552 = vmatprep.subr.mxu0 0.0
          %553 = vmatpush1.msra.mxu0 0.0
          %554 = vmatprep.subr.mxu0 0.0
          %555 = vmatpush1.msra.mxu0 0.0
          %556 = vmatprep.mubr.f32.mxu0 0.0
          %557 = vmatmul.mubr.f32.gmra.mrb[0].mxu0 %v490
          %v558 = vpop.f32.mrb[0].mxu0
          %v559 = vadd.f32 %v486, %v558
          %v560 = vpop.f32.mrb[0].mxu0
          %561 = vdwg.mxu0
          %vm562 = vcmask 64512
          %563 = vst.msk [vmem:[#allocation3] sm:$0xff] %vm562, %v559
          %565 = vrot.lane.b32.xlu0 %v559, 96
          %v566 = vpop.permute.xlu0 %565
          %568 = vst.msk [vmem:[#allocation4] sm:$0xff] %vm562, %v566
          %569 = vrot.lane.b32.xlu0 %v559, 120
          %v570 = vpop.permute.xlu0 %569
          %s572 = scalar_lea.vmem [#allocation3], 8
          %573 = vst.msk [vmem:[%s572] sm:$0xff] %vm562, %v570
          %574 = vrot.lane.b32.xlu0 %v559, 88
          %v575 = vpop.permute.xlu0 %574
          %s577 = scalar_lea.vmem [#allocation4], 8
          %578 = vst.msk [vmem:[%s577] sm:$0xff] %vm562, %v575
          %579 = vrot.lane.b32.xlu0 %v559, 112
          %v580 = vpop.permute.xlu0 %579
          %s582 = scalar_lea.vmem [#allocation3], 16
          %583 = vst.msk [vmem:[%s582] sm:$0xff] %vm562, %v580
          %584 = vrot.lane.b32.xlu0 %v559, 80
          %v585 = vpop.permute.xlu0 %584
          %s587 = scalar_lea.vmem [#allocation4], 16
          %588 = vst.msk [vmem:[%s587] sm:$0xff] %vm562, %v585
          %589 = vrot.lane.b32.xlu0 %v559, 104
          %v590 = vpop.permute.xlu0 %589
          %s592 = scalar_lea.vmem [#allocation3], 24
          %593 = vst.msk [vmem:[%s592] sm:$0xff] %vm562, %v590
          %594 = vrot.lane.b32.xlu0 %v559, 72
          %v595 = vpop.permute.xlu0 %594
          %s597 = scalar_lea.vmem [#allocation4], 24
          %598 = vst.msk [vmem:[%s597] sm:$0xff] %vm562, %v595
        $region84: #{tpu_custom_call.1} parent=59 // pred_fallthru
          _
        %v599 = vld [vmem:[%s409] sm:$0xff]
        %v600 = vld [vmem:[#allocation12] sm:$0xff]
        %v601 = vld [vmem:[#allocation12 + $0x8] sm:$0xff]
        %v602 = vld [vmem:[#allocation12 + $0x10] sm:$0xff]
        %v603 = vld [vmem:[#allocation12 + $0x18] sm:$0xff]
        %v604 = vld [vmem:[%s3] sm:$0x1]
        %v606 = vlaneseq
        %v607 = vshrl.u32 %v606, 7
        %v608 = vsub.s32 0, %v607
        %v609 = vrot.slane %v604, %v608
        %vm611 = vcmask 261120
        %v613 = vsel %vm611, %v599, 0
        %615 = vmatprep.subr.mxu0 0.0
        %616 = vmatpush1.msra.mxu0 %v600
        %617 = vmatprep.subr.mxu0 0.0
        %618 = vmatpush1.msra.mxu0 %v601
        %619 = vmatprep.subr.mxu0 0.0
        %620 = vmatpush1.msra.mxu0 %v602
        %621 = vmatprep.subr.mxu0 0.0
        %622 = vmatpush1.msra.mxu0 %v603
        %623 = vmatprep.subr.mxu0 0.0
        %624 = vmatpush1.msra.mxu0 0.0
        %625 = vmatprep.subr.mxu0 0.0
        %626 = vmatpush1.msra.mxu0 0.0
        %627 = vmatprep.subr.mxu0 0.0
        %628 = vmatpush1.msra.mxu0 0.0
        %629 = vmatprep.subr.mxu0 0.0
        %630 = vmatpush1.msra.mxu0 0.0
        %631 = vmatprep.subr.mxu0 0.0
        %632 = vmatpush1.msra.mxu0 0.0
        %633 = vmatprep.subr.mxu0 0.0
        %634 = vmatpush1.msra.mxu0 0.0
        %635 = vmatprep.subr.mxu0 0.0
        %636 = vmatpush1.msra.mxu0 0.0
        %637 = vmatprep.subr.mxu0 0.0
        %638 = vmatpush1.msra.mxu0 0.0
        %639 = vmatprep.subr.mxu0 0.0
        %640 = vmatpush1.msra.mxu0 0.0
        %641 = vmatprep.subr.mxu0 0.0
        %642 = vmatpush1.msra.mxu0 0.0
        %643 = vmatprep.subr.mxu0 0.0
        %644 = vmatpush1.msra.mxu0 0.0
        %645 = vmatprep.subr.mxu0 0.0
        %646 = vmatpush1.msra.mxu0 0.0
        %647 = vmatprep.subr.mxu0 0.0
        %648 = vmatpush1.msra.mxu0 0.0
        %649 = vmatprep.subr.mxu0 0.0
        %650 = vmatpush1.msra.mxu0 0.0
        %651 = vmatprep.subr.mxu0 0.0
        %652 = vmatpush1.msra.mxu0 0.0
        %653 = vmatprep.subr.mxu0 0.0
        %654 = vmatpush1.msra.mxu0 0.0
        %655 = vmatprep.subr.mxu0 0.0
        %656 = vmatpush1.msra.mxu0 0.0
        %657 = vmatprep.subr.mxu0 0.0
        %658 = vmatpush1.msra.mxu0 0.0
        %659 = vmatprep.subr.mxu0 0.0
        %660 = vmatpush1.msra.mxu0 0.0
        %661 = vmatprep.subr.mxu0 0.0
        %662 = vmatpush1.msra.mxu0 0.0
        %663 = vmatprep.subr.mxu0 0.0
        %664 = vmatpush1.msra.mxu0 0.0
        %665 = vmatprep.subr.mxu0 0.0
        %666 = vmatpush1.msra.mxu0 0.0
        %667 = vmatprep.subr.mxu0 0.0
        %668 = vmatpush1.msra.mxu0 0.0
        %669 = vmatprep.subr.mxu0 0.0
        %670 = vmatpush1.msra.mxu0 0.0
        %671 = vmatprep.subr.mxu0 0.0
        %672 = vmatpush1.msra.mxu0 0.0
        %673 = vmatprep.subr.mxu0 0.0
        %674 = vmatpush1.msra.mxu0 0.0
        %675 = vmatprep.subr.mxu0 0.0
        %676 = vmatpush1.msra.mxu0 0.0
        %677 = vmatprep.subr.mxu0 0.0
        %678 = vmatpush1.msra.mxu0 0.0
        %679 = vmatprep.mubr.f32.mxu0 0.0
        %680 = vmatmul.mubr.f32.gmra.mrb[0].mxu0 %v613
        %v681 = vpop.f32.mrb[0].mxu0
        %v682 = vadd.f32 %v609, %v681
        %v683 = vpop.f32.mrb[0].mxu0
        %684 = vdwg.mxu0
        %v685 = vmul.f32 %v682, 0.35355338
        %vm686 = vcmask 64512
        %687 = vst.msk [vmem:[#allocation2] sm:$0xff] %vm686, %v685
        %689 = vrot.lane.b32.xlu0 %v685, 120
        %v690 = vpop.permute.xlu0 %689
        %s692 = scalar_lea.vmem [#allocation2], 8
        %693 = vst.msk [vmem:[%s692] sm:$0xff] %vm686, %v690
        %694 = vrot.lane.b32.xlu0 %v685, 112
        %v695 = vpop.permute.xlu0 %694
        %s697 = scalar_lea.vmem [#allocation2], 16
        %698 = vst.msk [vmem:[%s697] sm:$0xff] %vm686, %v695
        %699 = vrot.lane.b32.xlu0 %v685, 104
        %v700 = vpop.permute.xlu0 %699
        %s702 = scalar_lea.vmem [#allocation2], 24
        %703 = vst.msk [vmem:[%s702] sm:$0xff] %vm686, %v700
        loop: start=0, step=1, limit=4
        $region85: #{tpu_custom_call.1} parent=59 // loop_pre_header
          _
        $region86: #{tpu_custom_call.1} parent=59 // loop_header
          %s705 = sphi 0, %s709
          %p706 = scmp.ge.s32.totalorder %s705, 4
        $region87: #{tpu_custom_call.1} parent=59 // loop_header_branch
          %708 = sbr.rel (%p706) target = $region91
        $region88: #{tpu_custom_call.1} parent=59 // loop_body
          %s710 = smul.u32 %s705, 8
          %s711 = scalar_lea.vmem [#allocation2], %s710
          %v712 = vld [vmem:[%s711] sm:$0xff]
          %s713 = scalar_lea.vmem [#allocation3], %s710
          %v714 = vld [vmem:[%s713] sm:$0xff]
          %s715 = scalar_lea.vmem [#allocation4], %s710
          %v716 = vld [vmem:[%s715] sm:$0xff]
          %v718 = vsel %vm686, %v712, 0
          %v721 = vsel %vm686, %v714, 0
          %723 = vmatprep.subr.mxu0 0.0
          %724 = vmatpush1.xpose.msra.mxu0 %v721
          %725 = vmatprep.subr.mxu0 0.0
          %726 = vmatpush1.xpose.msra.mxu0 0.0
          %727 = vmatprep.subr.mxu0 0.0
          %728 = vmatpush1.xpose.msra.mxu0 0.0
          %729 = vmatprep.subr.mxu0 0.0
          %730 = vmatpush1.xpose.msra.mxu0 0.0
          %731 = vmatprep.subr.mxu0 0.0
          %732 = vmatpush1.xpose.msra.mxu0 0.0
          %733 = vmatprep.subr.mxu0 0.0
          %734 = vmatpush1.xpose.msra.mxu0 0.0
          %735 = vmatprep.subr.mxu0 0.0
          %736 = vmatpush1.xpose.msra.mxu0 0.0
          %737 = vmatprep.subr.mxu0 0.0
          %738 = vmatpush1.xpose.msra.mxu0 0.0
          %739 = vmatprep.subr.mxu0 0.0
          %740 = vmatpush1.xpose.msra.mxu0 0.0
          %741 = vmatprep.subr.mxu0 0.0
          %742 = vmatpush1.xpose.msra.mxu0 0.0
          %743 = vmatprep.subr.mxu0 0.0
          %744 = vmatpush1.xpose.msra.mxu0 0.0
          %745 = vmatprep.subr.mxu0 0.0
          %746 = vmatpush1.xpose.msra.mxu0 0.0
          %747 = vmatprep.subr.mxu0 0.0
          %748 = vmatpush1.xpose.msra.mxu0 0.0
          %749 = vmatprep.subr.mxu0 0.0
          %750 = vmatpush1.xpose.msra.mxu0 0.0
          %751 = vmatprep.subr.mxu0 0.0
          %752 = vmatpush1.xpose.msra.mxu0 0.0
          %753 = vmatprep.subr.mxu0 0.0
          %754 = vmatpush1.xpose.msra.mxu0 0.0
          %755 = vmatprep.subr.mxu0 0.0
          %756 = vmatpush1.xpose.msra.mxu0 0.0
          %757 = vmatprep.subr.mxu0 0.0
          %758 = vmatpush1.xpose.msra.mxu0 0.0
          %759 = vmatprep.subr.mxu0 0.0
          %760 = vmatpush1.xpose.msra.mxu0 0.0
          %761 = vmatprep.subr.mxu0 0.0
          %762 = vmatpush1.xpose.msra.mxu0 0.0
          %763 = vmatprep.subr.mxu0 0.0
          %764 = vmatpush1.xpose.msra.mxu0 0.0
          %765 = vmatprep.subr.mxu0 0.0
          %766 = vmatpush1.xpose.msra.mxu0 0.0
          %767 = vmatprep.subr.mxu0 0.0
          %768 = vmatpush1.xpose.msra.mxu0 0.0
          %769 = vmatprep.subr.mxu0 0.0
          %770 = vmatpush1.xpose.msra.mxu0 0.0
          %771 = vmatprep.subr.mxu0 0.0
          %772 = vmatpush1.xpose.msra.mxu0 0.0
          %773 = vmatprep.subr.mxu0 0.0
          %774 = vmatpush1.xpose.msra.mxu0 0.0
          %775 = vmatprep.subr.mxu0 0.0
          %776 = vmatpush1.xpose.msra.mxu0 0.0
          %777 = vmatprep.subr.mxu0 0.0
          %778 = vmatpush1.xpose.msra.mxu0 0.0
          %779 = vmatprep.subr.mxu0 0.0
          %780 = vmatpush1.xpose.msra.mxu0 0.0
          %781 = vmatprep.subr.mxu0 0.0
          %782 = vmatpush1.xpose.msra.mxu0 0.0
          %783 = vmatprep.subr.mxu0 0.0
          %784 = vmatpush1.xpose.msra.mxu0 0.0
          %785 = vmatprep.subr.mxu0 0.0
          %786 = vmatpush1.xpose.msra.mxu0 0.0
          %787 = vmatprep.mubr.f32.mxu0 0.0
          %788 = vmatmul.mubr.f32.gmra.mrb[0].mxu0 %v718
          %v789 = vpop.f32.mrb[0].mxu0
          %v790 = vadd.f32 0.0, %v789
          %v791 = vpop.f32.mrb[0].mxu0
          %792 = vdwg.mxu0
          %v793 = vsel %vm686, %v790, -inf
          %794 = vmax.xlane.f32.xlu0 %v793
          %v795 = vpop.xlane.xlu0 %794
          %v796 = vsub.f32 %v790, %v795
          %v797 = vmul.f32 %v796, 1.442695
          %v798 = vpow.pop %v797
          %v799 = vsel %vm686, %v798, 0.0
          %800 = vadd.xlane.f32.xlu0 %v799
          %v801 = vpop.xlane.xlu0 %800
          %v802 = vrcp.pop %v801
          %v803 = vmul.f32 %v801, %v802
          %v804 = vsub.f32 2.0, %v803
          %v805 = vmul.f32 %v802, %v804
          %v806 = vmul.f32 %v798, %v805
          %v808 = vsel %vm686, %v806, 0
          %810 = vmatprep.subr.mxu0 0.0
          %811 = vmatpush1.msra.mxu0 %v716
          %812 = vmatprep.subr.mxu0 0.0
          %813 = vmatpush1.msra.mxu0 0.0
          %814 = vmatprep.subr.mxu0 0.0
          %815 = vmatpush1.msra.mxu0 0.0
          %816 = vmatprep.subr.mxu0 0.0
          %817 = vmatpush1.msra.mxu0 0.0
          %818 = vmatprep.subr.mxu0 0.0
          %819 = vmatpush1.msra.mxu0 0.0
          %820 = vmatprep.subr.mxu0 0.0
          %821 = vmatpush1.msra.mxu0 0.0
          %822 = vmatprep.subr.mxu0 0.0
          %823 = vmatpush1.msra.mxu0 0.0
          %824 = vmatprep.subr.mxu0 0.0
          %825 = vmatpush1.msra.mxu0 0.0
          %826 = vmatprep.subr.mxu0 0.0
          %827 = vmatpush1.msra.mxu0 0.0
          %828 = vmatprep.subr.mxu0 0.0
          %829 = vmatpush1.msra.mxu0 0.0
          %830 = vmatprep.subr.mxu0 0.0
          %831 = vmatpush1.msra.mxu0 0.0
          %832 = vmatprep.subr.mxu0 0.0
          %833 = vmatpush1.msra.mxu0 0.0
          %834 = vmatprep.subr.mxu0 0.0
          %835 = vmatpush1.msra.mxu0 0.0
          %836 = vmatprep.subr.mxu0 0.0
          %837 = vmatpush1.msra.mxu0 0.0
          %838 = vmatprep.subr.mxu0 0.0
          %839 = vmatpush1.msra.mxu0 0.0
          %840 = vmatprep.subr.mxu0 0.0
          %841 = vmatpush1.msra.mxu0 0.0
          %842 = vmatprep.subr.mxu0 0.0
          %843 = vmatpush1.msra.mxu0 0.0
          %844 = vmatprep.subr.mxu0 0.0
          %845 = vmatpush1.msra.mxu0 0.0
          %846 = vmatprep.subr.mxu0 0.0
          %847 = vmatpush1.msra.mxu0 0.0
          %848 = vmatprep.subr.mxu0 0.0
          %849 = vmatpush1.msra.mxu0 0.0
          %850 = vmatprep.subr.mxu0 0.0
          %851 = vmatpush1.msra.mxu0 0.0
          %852 = vmatprep.subr.mxu0 0.0
          %853 = vmatpush1.msra.mxu0 0.0
          %854 = vmatprep.subr.mxu0 0.0
          %855 = vmatpush1.msra.mxu0 0.0
          %856 = vmatprep.subr.mxu0 0.0
          %857 = vmatpush1.msra.mxu0 0.0
          %858 = vmatprep.subr.mxu0 0.0
          %859 = vmatpush1.msra.mxu0 0.0
          %860 = vmatprep.subr.mxu0 0.0
          %861 = vmatpush1.msra.mxu0 0.0
          %862 = vmatprep.subr.mxu0 0.0
          %863 = vmatpush1.msra.mxu0 0.0
          %864 = vmatprep.subr.mxu0 0.0
          %865 = vmatpush1.msra.mxu0 0.0
          %866 = vmatprep.subr.mxu0 0.0
          %867 = vmatpush1.msra.mxu0 0.0
          %868 = vmatprep.subr.mxu0 0.0
          %869 = vmatpush1.msra.mxu0 0.0
          %870 = vmatprep.subr.mxu0 0.0
          %871 = vmatpush1.msra.mxu0 0.0
          %872 = vmatprep.subr.mxu0 0.0
          %873 = vmatpush1.msra.mxu0 0.0
          %874 = vmatprep.mubr.f32.mxu0 0.0
          %875 = vmatmul.mubr.f32.gmra.mrb[0].mxu0 %v808
          %v876 = vpop.f32.mrb[0].mxu0
          %v877 = vadd.f32 0.0, %v876
          %v878 = vpop.f32.mrb[0].mxu0
          %879 = vdwg.mxu0
          %s880 = scalar_lea.vmem [#allocation5], %s710
          %881 = vst.msk [vmem:[%s880] sm:$0xff] %vm686, %v877
        $region89: #{tpu_custom_call.1} parent=59 // loop_footer
          %s709 = sadd.s32 1, %s705
        $region90: #{tpu_custom_call.1} parent=59 // loop_footer_branch
          %704 = sbr.rel target = $region86
        $region91: #{tpu_custom_call.1} parent=59 // loop_exit
          _
        %v882 = vld [vmem:[#allocation5] sm:$0xff]
        %883 = vst.msk [vmem:[#allocation6] sm:$0xff] %vm686, %v882
        %s884 = scalar_lea.vmem [#allocation5], 8
        %v885 = vld [vmem:[%s884] sm:$0xff]
        %887 = vrot.lane.b32.xlu0 %v885, 8
        %v888 = vpop.permute.xlu0 %887
        %vm890 = vcmask 130112
        %891 = vst.msk [vmem:[#allocation6] sm:$0xff] %vm890, %v888
        %s892 = scalar_lea.vmem [#allocation5], 16
        %v893 = vld [vmem:[%s892] sm:$0xff]
        %895 = vrot.lane.b32.xlu0 %v893, 16
        %v896 = vpop.permute.xlu0 %895
        %vm898 = vcmask 195712
        %899 = vst.msk [vmem:[#allocation6] sm:$0xff] %vm898, %v896
        %s900 = scalar_lea.vmem [#allocation5], 24
        %v901 = vld [vmem:[%s900] sm:$0xff]
        %903 = vrot.lane.b32.xlu0 %v901, 24
        %v904 = vpop.permute.xlu0 %903
        %vm906 = vcmask 261312
        %907 = vst.msk [vmem:[#allocation6] sm:$0xff] %vm906, %v904
        %v908 = vld [vmem:[#allocation6] sm:$0xff]
        %v909 = vld [vmem:[#allocation15] sm:$0xff]
        %v910 = vld [vmem:[#allocation15 + $0x8] sm:$0xff]
        %v911 = vld [vmem:[#allocation15 + $0x10] sm:$0xff]
        %v912 = vld [vmem:[#allocation15 + $0x18] sm:$0xff]
        %v913 = vld [vmem:[%s7] sm:$0x1]
        %v915 = vlaneseq
        %v916 = vshrl.u32 %v915, 7
        %v917 = vsub.s32 0, %v916
        %v918 = vrot.slane %v913, %v917
        %v921 = vsel %vm611, %v908, 0
        %923 = vmatprep.subr.mxu0 0.0
        %924 = vmatpush1.msra.mxu0 %v909
        %925 = vmatprep.subr.mxu0 0.0
        %926 = vmatpush1.msra.mxu0 %v910
        %927 = vmatprep.subr.mxu0 0.0
        %928 = vmatpush1.msra.mxu0 %v911
        %929 = vmatprep.subr.mxu0 0.0
        %930 = vmatpush1.msra.mxu0 %v912
        %931 = vmatprep.subr.mxu0 0.0
        %932 = vmatpush1.msra.mxu0 0.0
        %933 = vmatprep.subr.mxu0 0.0
        %934 = vmatpush1.msra.mxu0 0.0
        %935 = vmatprep.subr.mxu0 0.0
        %936 = vmatpush1.msra.mxu0 0.0
        %937 = vmatprep.subr.mxu0 0.0
        %938 = vmatpush1.msra.mxu0 0.0
        %939 = vmatprep.subr.mxu0 0.0
        %940 = vmatpush1.msra.mxu0 0.0
        %941 = vmatprep.subr.mxu0 0.0
        %942 = vmatpush1.msra.mxu0 0.0
        %943 = vmatprep.subr.mxu0 0.0
        %944 = vmatpush1.msra.mxu0 0.0
        %945 = vmatprep.subr.mxu0 0.0
        %946 = vmatpush1.msra.mxu0 0.0
        %947 = vmatprep.subr.mxu0 0.0
        %948 = vmatpush1.msra.mxu0 0.0
        %949 = vmatprep.subr.mxu0 0.0
        %950 = vmatpush1.msra.mxu0 0.0
        %951 = vmatprep.subr.mxu0 0.0
        %952 = vmatpush1.msra.mxu0 0.0
        %953 = vmatprep.subr.mxu0 0.0
        %954 = vmatpush1.msra.mxu0 0.0
        %955 = vmatprep.subr.mxu0 0.0
        %956 = vmatpush1.msra.mxu0 0.0
        %957 = vmatprep.subr.mxu0 0.0
        %958 = vmatpush1.msra.mxu0 0.0
        %959 = vmatprep.subr.mxu0 0.0
        %960 = vmatpush1.msra.mxu0 0.0
        %961 = vmatprep.subr.mxu0 0.0
        %962 = vmatpush1.msra.mxu0 0.0
        %963 = vmatprep.subr.mxu0 0.0
        %964 = vmatpush1.msra.mxu0 0.0
        %965 = vmatprep.subr.mxu0 0.0
        %966 = vmatpush1.msra.mxu0 0.0
        %967 = vmatprep.subr.mxu0 0.0
        %968 = vmatpush1.msra.mxu0 0.0
        %969 = vmatprep.subr.mxu0 0.0
        %970 = vmatpush1.msra.mxu0 0.0
        %971 = vmatprep.subr.mxu0 0.0
        %972 = vmatpush1.msra.mxu0 0.0
        %973 = vmatprep.subr.mxu0 0.0
        %974 = vmatpush1.msra.mxu0 0.0
        %975 = vmatprep.subr.mxu0 0.0
        %976 = vmatpush1.msra.mxu0 0.0
        %977 = vmatprep.subr.mxu0 0.0
        %978 = vmatpush1.msra.mxu0 0.0
        %979 = vmatprep.subr.mxu0 0.0
        %980 = vmatpush1.msra.mxu0 0.0
        %981 = vmatprep.subr.mxu0 0.0
        %982 = vmatpush1.msra.mxu0 0.0
        %983 = vmatprep.subr.mxu0 0.0
        %984 = vmatpush1.msra.mxu0 0.0
        %985 = vmatprep.subr.mxu0 0.0
        %986 = vmatpush1.msra.mxu0 0.0
        %987 = vmatprep.mubr.f32.mxu0 0.0
        %988 = vmatmul.mubr.f32.gmra.mrb[0].mxu0 %v921
        %v989 = vpop.f32.mrb[0].mxu0
        %v990 = vadd.f32 %v918, %v989
        %v991 = vpop.f32.mrb[0].mxu0
        %992 = vdwg.mxu0
        %v993 = vadd.f32 %v990, %v599
        %v994 = vsel %vm611, %v993, 0.0
        %995 = vadd.xlane.f32.xlu0 %v994
        %v996 = vpop.xlane.xlu0 %995
        %v997 = vrcp.pop 32.0
        %v998 = vmul.f32 %v996, %v997
        %v999 = vsub.f32 %v993, %v998
        %v1000 = vmul.f32 %v999, %v999
        %v1001 = vsel %vm611, %v1000, 0.0
        %1002 = vadd.xlane.f32.xlu0 %v1001
        %v1003 = vpop.xlane.xlu0 %1002
        %v1004 = vmul.f32 %v1003, %v997
        %v1005 = vadd.f32 %v1004, 1e-12
        %v1006 = vrsqrt.pop %v1005
        %v1007 = vmul.f32 %v999, %v1006
        %v1008 = vld [vmem:[%s8] sm:$0x1]
        %v1010 = vlaneseq
        %v1011 = vshrl.u32 %v1010, 7
        %v1012 = vsub.s32 0, %v1011
        %v1013 = vrot.slane %v1008, %v1012
        %v1015 = vmul.f32 %v1007, %v1013
        %v1016 = vld [vmem:[%s9] sm:$0x1]
        %v1018 = vlaneseq
        %v1019 = vshrl.u32 %v1018, 7
        %v1020 = vsub.s32 0, %v1019
        %v1021 = vrot.slane %v1016, %v1020
        %v1023 = vadd.f32 %v1015, %v1021
        %1024 = vst.msk [vmem:[%s471] sm:$0xff] %vm611, %v1023
        %s1025 = sand.u32 %s275, 1
        %s1026 = scalar_lea.sflag [#allocation9], %s1025
        %s1027 = sand.u32 %s275, 1
        %s1028 = smul.addr %s1027, 8
        %s1029 = scalar_lea.vmem [#allocation16], %s1028
        // Predicated region
        $region92: #{tpu_custom_call.1} parent=59 // pred_check
          %p1030 = pneg %p285
        $region93: #{tpu_custom_call.1} parent=59 // pred_check_branch
          %1032 = sbr.rel (%p1030) target = $region95
        $region94: #{tpu_custom_call.1} parent=59 // pred_region
          %s1034 = ssub.s32 128, 128
          %1035 = vsyncadd %s1026, %s1034
          %s1036 = sadd.s32 %s36, %s35
          %s1037 = smul.addr %s1036, 128
          %s1038 = scalar_lea.hbm %s10, %s1037
          %s1040 = sshll.u32 %s1029, 4
          %s1041 = int_to_ptr.vmem [resolvable:$true] %s1040
          %1043 = dma.vmem_to_hbm [thread:$0]  %s1041, 128, %s1038, %s1026
        $region95: #{tpu_custom_call.1} parent=59 // pred_fallthru
          _
      $region60: #{tpu_custom_call.1} parent=5 // pred_fallthru
        _
      %p1044 = scmp.le.s32.totalorder 2, %s26
      // Predicated region
      $region96: #{tpu_custom_call.1} parent=5 // pred_check
        %p1045 = pneg %p1044
      $region97: #{tpu_custom_call.1} parent=5 // pred_check_branch
        %1047 = sbr.rel (%p1045) target = $region99
      $region98: #{tpu_custom_call.1} parent=5 // pred_region
        %s1048 = ssub.s32 %s26, 2
        // Predicated region
        $region100: #{tpu_custom_call.1} parent=98 // pred_check
          %p1049 = pneg %p291
        $region101: #{tpu_custom_call.1} parent=98 // pred_check_branch
          %1051 = sbr.rel (%p1049) target = $region103
        $region102: #{tpu_custom_call.1} parent=98 // pred_region
          %s1052 = sand.u32 %s276, 1
          %s1053 = scalar_lea.sflag [#allocation9], %s1052
          %s1054 = sand.u32 %s276, 1
          %s1055 = smul.addr %s1054, 8
          %s1056 = scalar_lea.vmem [#allocation16], %s1055
          %1057 = dma.done %s1053, 128
        $region103: #{tpu_custom_call.1} parent=98 // pred_fallthru
          _
      $region99: #{tpu_custom_call.1} parent=5 // pred_fallthru
        _
    $region6: #{tpu_custom_call.1} parent=1 // loop_footer
      %s30 = sadd.s32 1, %s26
    $region7: #{tpu_custom_call.1} parent=1 // loop_footer_branch
      %25 = sbr.rel target = $region3
    $region8: #{tpu_custom_call.1} parent=1 // loop_exit
      _
    %1058 = vsyncpa [#allocation8], 1
    %s1059 = scalar_lea.sflag [#allocation8], 1
    %1060 = vsyncpa %s1059, 1
    %1061 = vsyncpa [#allocation11], 1
    %s1062 = scalar_lea.sflag [#allocation11], 1
    %1063 = vsyncpa %s1062, 1
    %1064 = vsyncpa [#allocation14], 1
    %1065 = vsyncpa [#allocation9], 1
    %s1066 = scalar_lea.sflag [#allocation9], 1
    %1067 = vsyncpa %s1066, 1

</llo_original>
